<compile_context>
chip_gen: v6e
topology: v6e:2x2x1
jax: 0.10.0
libtpu: 0.0.40
codegen_flags: <defaults>
</compile_context>

<pallas_src>
import functools

import jax
import jax.numpy as jnp
from jax import lax
from jax.experimental import pallas as pl
from jax.experimental.pallas import tpu as pltpu


# --------------------------------------------------------------------------
# Flash-attention kernel (online softmax) + fused output projection
# --------------------------------------------------------------------------
def _flash_attn_kernel(q_ref, kt_ref, v_ref, wp_ref, bp_ref, o_ref,
                       m_sc, l_sc, acc_sc, *,
                       num_heads, seq_len, padded_len, tk):
    """One (batch, q-tile, kv-tile) grid step; kv is the innermost reduction.

    q_ref  : (H, TQ, HD)   query tile (softmax scale already folded in)
    kt_ref : (H, HD, TK)   key tile, pre-transposed (lane-dense for HD < 128)
    v_ref  : (H, TK, HD)   value tile
    wp_ref : (H, HD, C)    per-head output-projection weight (grid-invariant)
    bp_ref : (1, C)        output-projection bias
    o_ref  : (TQ, C)       lane-dense final store
    m_sc / l_sc : (H, TQ, 1) f32 scratch    acc_sc : (H, TQ, HD) f32 scratch
    """
    kv = pl.program_id(2)

    @pl.when(kv == 0)
    def _init():
        m_sc[...] = jnp.full(m_sc.shape, -jnp.inf, dtype=m_sc.dtype)
        l_sc[...] = jnp.zeros(l_sc.shape, dtype=l_sc.dtype)
        acc_sc[...] = jnp.zeros(acc_sc.shape, dtype=acc_sc.dtype)

    # (H, TQ, TK) logits tile: MXU inputs keep the activation dtype,
    # accumulation in f32.  No per-step scale multiply (folded into Wq).
    s = jnp.einsum('hqd,hdk->hqk', q_ref[...], kt_ref[...],
                   preferred_element_type=jnp.float32)

    if padded_len != seq_len:            # static: mask padded key columns
        col = lax.broadcasted_iota(jnp.int32, s.shape, 2) + kv * tk
        s = jnp.where(col < seq_len, s, -jnp.inf)

    m_prev = m_sc[...]
    m_new = jnp.maximum(m_prev, s.max(axis=-1, keepdims=True))
    alpha = jnp.exp(m_prev - m_new)
    p = jnp.exp(s - m_new)               # f32 softmax math
    l_sc[...] = alpha * l_sc[...] + p.sum(axis=-1, keepdims=True)
    acc_sc[...] = alpha * acc_sc[...] + jnp.einsum(
        'hqk,hkd->hqd', p.astype(v_ref.dtype), v_ref[...],
        preferred_element_type=jnp.float32)
    m_sc[...] = m_new

    @pl.when(kv == pl.num_programs(2) - 1)
    def _finalize():
        # Exact normalization (runs once per q-tile), then fused output
        # projection:  concat_h(O_h) @ Wp + b  ==  sum_h O_h @ Wp_h + b.
        # Static head loop keeps the intermediate at (TQ, C) f32 — no
        # (H, TQ, C) temporary, no separate proj kernel / HBM round trip.
        o_h = (acc_sc[...] / l_sc[...]).astype(wp_ref.dtype)   # (H, TQ, HD)
        acc = jnp.zeros(o_ref.shape, jnp.float32)
        for h in range(num_heads):
            acc = acc + jnp.dot(o_h[h], wp_ref[h],
                                preferred_element_type=jnp.float32)
        o_ref[...] = (acc + bp_ref[...].astype(jnp.float32)).astype(o_ref.dtype)


# --------------------------------------------------------------------------
# Wrapper helpers
# --------------------------------------------------------------------------
def _round_up(x, m):
    return ((x + m - 1) // m) * m


def _chip_config():
    """(seq-tile cap, scoped VMEM budget in bytes) per TPU generation."""
    try:
        kind = jax.devices()[0].device_kind.lower()
    except Exception:
        kind = ""
    if "v7" in kind or "tpu7" in kind:           # 64 MiB physical VMEM
        return 256, 48 * 1024 * 1024
    if "v5" in kind or "v6" in kind:             # 128 MiB physical VMEM
        return 256, 64 * 1024 * 1024
    return 128, 32 * 1024 * 1024                 # conservative default


def _vmem_bytes(tq, tk, num_heads, head_dim, dim, itemsize):
    """Rough double-buffered VMEM footprint of the flash kernel (bytes)."""
    in_blocks = (num_heads * tq * head_dim            # q tile
                 + num_heads * head_dim * tk          # k^T tile
                 + num_heads * tk * head_dim          # v tile
                 + num_heads * head_dim * dim         # wp (grid-invariant)
                 + dim) * itemsize                    # bp
    out_block = tq * dim * itemsize
    scratch = (2 * num_heads * tq + num_heads * tq * head_dim) * 4
    return 2 * (in_blocks + out_block) + scratch


# --------------------------------------------------------------------------
# Public wrapper
# --------------------------------------------------------------------------
@functools.partial(jax.jit,
                   static_argnames=("num_heads", "qk_scale", "activation_dtype"))
def efficient_self_attention(x, w_qkv, b_qkv, w_proj, b_proj, num_heads,
                             qk_scale=None, activation_dtype=None):
    """x: (B, N, C); w_qkv: (C, 3C) [y = x @ W + b layout]; b_qkv: (3C,)|None;
    w_proj: (C, C); b_proj: (C,).  Returns (B, N, C) in x.dtype."""
    B, N, C = x.shape
    H = num_heads
    assert C % H == 0
    HD = C // H
    scale = float(qk_scale) if qk_scale is not None else HD ** (-0.5)
    act_dtype = jnp.dtype(x.dtype if activation_dtype is None else activation_dtype)

    # ---- fold the softmax scale into the q columns of the QKV weight (f32) --
    col_scale = jnp.concatenate(
        [jnp.full((C,), scale, jnp.float32), jnp.ones((2 * C,), jnp.float32)])
    w = (w_qkv.astype(jnp.float32) * col_scale[None, :]).astype(x.dtype)
    if b_qkv is None:                                       # qkv_bias=False
        b = jnp.zeros((3 * C,), x.dtype)
    else:
        b = (b_qkv.astype(jnp.float32) * col_scale).astype(x.dtype)

    # ---- QKV projection: dense (B*N, C) @ (C, 3C) GEMM — leave it to XLA ----
    qkv = (x.reshape(B * N, C) @ w + b).reshape(B, N, 3, H, HD)
    qkv = qkv.transpose(2, 0, 3, 1, 4).astype(act_dtype)    # (3, B, H, N, HD)
    q, k, v = qkv[0], qkv[1], qkv[2]
    kt = k.transpose(0, 1, 3, 2)              # (B, H, HD, N): lane-dense tiles

    wp = w_proj.reshape(H, HD, C).astype(act_dtype)         # per-head proj W
    bp = b_proj.reshape(1, C).astype(act_dtype)

    # ---- tiling / sequence padding ------------------------------------------
    cap, vmem_limit = _chip_config()
    if N <= cap:
        n_pad = _round_up(N, 8)
        tq = tk = n_pad
    else:
        n_pad = _round_up(N, 128)
        tq = tk = 256 if (cap >= 256 and n_pad % 256 == 0) else 128
        while tq > 128 and _vmem_bytes(tq, tk, H, HD, C,
                                       act_dtype.itemsize) > int(0.9 * vmem_limit):
            tq //= 2
            tk //= 2
    if n_pad != N:
        pad = n_pad - N
        q = jnp.pad(q, ((0, 0), (0, 0), (0, pad), (0, 0)))
        kt = jnp.pad(kt, ((0, 0), (0, 0), (0, 0), (0, pad)))
        v = jnp.pad(v, ((0, 0), (0, 0), (0, pad), (0, 0)))
    nq, nk = n_pad // tq, n_pad // tk

    itemsize = act_dtype.itemsize
    cost = pl.CostEstimate(
        flops=int(B * (4 * n_pad * n_pad * C + 2 * n_pad * C * C)),
        transcendentals=int(B * H * n_pad * n_pad),
        bytes_accessed=int(itemsize * (2 * B * n_pad * C              # q + out
                                       + 2 * nq * B * n_pad * C       # k/v streams
                                       + C * C + C)))

    out = pl.pallas_call(
        functools.partial(_flash_attn_kernel, num_heads=H, seq_len=N,
                          padded_len=n_pad, tk=tk),
        out_shape=jax.ShapeDtypeStruct((B, n_pad, C), x.dtype),
        grid=(B, nq, nk),                          # reduction (kv) axis last
        in_specs=[
            pl.BlockSpec((None, H, tq, HD), lambda b, i, j: (b, 0, i, 0)),
            pl.BlockSpec((None, H, HD, tk), lambda b, i, j: (b, 0, 0, j)),
            pl.BlockSpec((None, H, tk, HD), lambda b, i, j: (b, 0, j, 0)),
            # wp / bp are grid-invariant (constant index_map -> fetched once).
            pl.BlockSpec((H, HD, C), lambda b, i, j: (0, 0, 0)),
            pl.BlockSpec((1, C), lambda b, i, j: (0, 0)),
        ],
        out_specs=pl.BlockSpec((None, tq, C), lambda b, i, j: (b, i, 0)),
        scratch_shapes=[
            pltpu.VMEM((H, tq, 1), jnp.float32),      # m (running max)
            pltpu.VMEM((H, tq, 1), jnp.float32),      # l (running denominator)
            pltpu.VMEM((H, tq, HD), jnp.float32),     # acc (unnormalized O)
        ],
        compiler_params=pltpu.CompilerParams(
            dimension_semantics=("parallel", "parallel", "arbitrary"),
            vmem_limit_bytes=vmem_limit),
        cost_estimate=cost,
    )(q, kt, v, wp, bp)

    # attn_drop / proj_drop are identity at inference (p = 0.0).
    # TODO(synk): training-mode dropout (p > 0) would need pltpu.prng_* in-kernel.
    return out[:, :N, :] if n_pad != N else out


# --------------------------------------------------------------------------
# Pure-JAX reference (mirror of the PyTorch fallback path)
# --------------------------------------------------------------------------
def _reference(x, w_qkv, b_qkv, w_proj, b_proj, num_heads, qk_scale=None):
    B, N, C = x.shape
    hd = C // num_heads
    scale = qk_scale if qk_scale is not None else hd ** (-0.5)
    bias = 0.0 if b_qkv is None else b_qkv
    qkv = x @ w_qkv + bias                                    # (B, N, 3C)
    qkv = qkv.reshape(B, N, 3, num_heads, hd).transpose(2, 0, 3, 1, 4)
    q, k, v = qkv[0], qkv[1], qkv[2]                          # (B, H, N, hd)
    attn = jnp.einsum('bhqd,bhkd->bhqk', q, k) * scale
    attn = jax.nn.softmax(attn, axis=-1)
    out = jnp.einsum('bhqk,bhkd->bhqd', attn, v)              # (B, H, N, hd)
    out = out.transpose(0, 2, 1, 3).reshape(B, N, C)
    return out @ w_proj + b_proj


if __name__ == "__main__":
    key = jax.random.PRNGKey(0)

    def make_case(k, B, N, C, qkv_bias):
        kx, kw1, kb1, kw2, kb2 = jax.random.split(k, 5)
        x = jax.random.normal(kx, (B, N, C), dtype=jnp.float32)
        # nn.Linear(dim, 3*dim) weight is (3C, C) in PyTorch; kept transposed as
        # (C, 3C) for y = x @ W + b.
        w_qkv = jax.random.normal(kw1, (C, 3 * C), dtype=jnp.float32) * C ** -0.5
        b_qkv = (jax.random.normal(kb1, (3 * C,), dtype=jnp.float32) * 0.02
                 if qkv_bias else None)
        w_proj = jax.random.normal(kw2, (C, C), dtype=jnp.float32) * C ** -0.5
        b_proj = jax.random.normal(kb2, (C,), dtype=jnp.float32) * 0.02
        return x, w_qkv, b_qkv, w_proj, b_proj

    k1, k2 = jax.random.split(key)

    # Case 1: small shape consistent with the module: (B, N, C) = (2, 8, 32),
    # 4 heads, qkv_bias=True.  Single kv tile (tile == sequence).
    args1 = make_case(k1, 2, 8, 32, qkv_bias=True)
    out1 = jax.block_until_ready(efficient_self_attention(*args1, num_heads=4))
    ref1 = _reference(*args1, num_heads=4)
    assert out1.shape == ref1.shape
    err1 = float(jnp.max(jnp.abs(out1 - ref1)))
    assert jnp.allclose(out1, ref1, atol=2e-3, rtol=2e-3), f"case1 max err {err1}"

    # Case 2: exercises the multi-step online softmax (several kv tiles) and the
    # sequence padding + key-column masking path (N = 300 -> padded 384),
    # plus qkv_bias=False.
    args2 = make_case(k2, 2, 300, 32, qkv_bias=False)
    out2 = jax.block_until_ready(efficient_self_attention(*args2, num_heads=4))
    ref2 = _reference(*args2, num_heads=4)
    assert out2.shape == ref2.shape
    err2 = float(jnp.max(jnp.abs(out2 - ref2)))
    assert jnp.allclose(out2, ref2, atol=2e-3, rtol=2e-3), f"case2 max err {err2}"

    print("KERNEL_OK")
</pallas_src>

<mosaic_0001>
module attributes {stable_mosaic.version = 11 : i64} {
  func.func @_flash_attn_kernel(%arg0: i32, %arg1: i32, %arg2: i32, %arg3: memref<1x4x8x8xf32, #tpu.memory_space<vmem>>, %arg4: memref<1x4x8x8xf32, #tpu.memory_space<vmem>>, %arg5: memref<1x4x8x8xf32, #tpu.memory_space<vmem>>, %arg6: memref<4x8x32xf32, #tpu.memory_space<vmem>>, %arg7: memref<1x32xf32, #tpu.memory_space<vmem>>, %arg8: memref<1x8x32xf32, #tpu.memory_space<vmem>>, %arg9: memref<4x8x1xf32, #tpu.memory_space<vmem>>, %arg10: memref<4x8x1xf32, #tpu.memory_space<vmem>>, %arg11: memref<4x8x8xf32, #tpu.memory_space<vmem>>) attributes {dimension_semantics = [#tpu.dimension_semantics<parallel>, #tpu.dimension_semantics<parallel>, #tpu.dimension_semantics<arbitrary>], iteration_bounds = array<i64: 2, 1, 1>, scalar_prefetch = 0 : i64, scratch_operands = 3 : i64, tpu.core_type = #tpu.core_type<tc>, window_params = [{transform_indices = @transform_0, window_bounds = array<i64: 1, 4, 8, 8>}, {transform_indices = @transform_1, window_bounds = array<i64: 1, 4, 8, 8>}, {transform_indices = @transform_2, window_bounds = array<i64: 1, 4, 8, 8>}, {pipeline_mode = #tpu.pipeline_mode<synchronous>, transform_indices = @transform_3, window_bounds = array<i64: 4, 8, 32>}, {pipeline_mode = #tpu.pipeline_mode<synchronous>, transform_indices = @transform_4, window_bounds = array<i64: 1, 32>}, {transform_indices = @transform_5, window_bounds = array<i64: 1, 8, 32>}]} {
    %c0_i32 = arith.constant 0 : i32
    %0 = arith.cmpi eq, %arg2, %c0_i32 : i32
    %1 = arith.extui %0 : i1 to i32
    %c0_i32_0 = arith.constant 0 : i32
    %2 = arith.cmpi ne, %1, %c0_i32_0 : i32
    scf.if %2 {
      %cst_35 = arith.constant 0xFF800000 : f32
      %35 = vector.broadcast %cst_35 : f32 to vector<4x8x1xf32>
      %c0_36 = arith.constant 0 : index
      %c0_37 = arith.constant 0 : index
      %c0_38 = arith.constant 0 : index
      %36 = vector.load %arg9[%c0_36, %c0_37, %c0_38] : memref<4x8x1xf32, #tpu.memory_space<vmem>>, vector<4x8x1xf32>
      tpu.vector_store %arg9[%c0_36, %c0_37, %c0_38], %35 {strides = array<i32>} : memref<4x8x1xf32, #tpu.memory_space<vmem>>, vector<4x8x1xf32>,
      %cst_39 = arith.constant 0.000000e+00 : f32
      %37 = vector.broadcast %cst_39 : f32 to vector<4x8x1xf32>
      %c0_40 = arith.constant 0 : index
      %c0_41 = arith.constant 0 : index
      %c0_42 = arith.constant 0 : index
      %38 = vector.load %arg10[%c0_40, %c0_41, %c0_42] : memref<4x8x1xf32, #tpu.memory_space<vmem>>, vector<4x8x1xf32>
      tpu.vector_store %arg10[%c0_40, %c0_41, %c0_42], %37 {strides = array<i32>} : memref<4x8x1xf32, #tpu.memory_space<vmem>>, vector<4x8x1xf32>,
      %cst_43 = arith.constant 0.000000e+00 : f32
      %39 = vector.broadcast %cst_43 : f32 to vector<4x8x8xf32>
      %c0_44 = arith.constant 0 : index
      %c0_45 = arith.constant 0 : index
      %c0_46 = arith.constant 0 : index
      %40 = vector.load %arg11[%c0_44, %c0_45, %c0_46] : memref<4x8x8xf32, #tpu.memory_space<vmem>>, vector<4x8x8xf32>
      tpu.vector_store %arg11[%c0_44, %c0_45, %c0_46], %39 {strides = array<i32>} : memref<4x8x8xf32, #tpu.memory_space<vmem>>, vector<4x8x8xf32>,
    } else {
    }
    %c0 = arith.constant 0 : index
    %c0_1 = arith.constant 0 : index
    %c0_2 = arith.constant 0 : index
    %c0_3 = arith.constant 0 : index
    %3 = vector.load %arg3[%c0, %c0_1, %c0_2, %c0_3] : memref<1x4x8x8xf32, #tpu.memory_space<vmem>>, vector<1x4x8x8xf32>
    %4 = vector.shape_cast %3 : vector<1x4x8x8xf32> to vector<4x8x8xf32>
    %c0_4 = arith.constant 0 : index
    %c0_5 = arith.constant 0 : index
    %c0_6 = arith.constant 0 : index
    %c0_7 = arith.constant 0 : index
    %5 = vector.load %arg4[%c0_4, %c0_5, %c0_6, %c0_7] : memref<1x4x8x8xf32, #tpu.memory_space<vmem>>, vector<1x4x8x8xf32>
    %6 = vector.shape_cast %5 : vector<1x4x8x8xf32> to vector<4x8x8xf32>
    "tpu.trace_start"() <{level = 10 : i32, message = "hqd,hdk->hqk"}> : () -> ()
    %cst = arith.constant dense<0.000000e+00> : vector<4x8x8xf32>
    %7 = tpu.matmul %4, %6, %cst {dimension_numbers = #tpu.dot_dimension_numbers<[2], [1], [1], [2], [0, 0, 0, 1, 1, 2], [0], [0]>} : vector<4x8x8xf32>, vector<4x8x8xf32>, vector<4x8x8xf32> -> vector<4x8x8xf32>
    "tpu.trace_stop"() : () -> ()
    %c0_8 = arith.constant 0 : index
    %c0_9 = arith.constant 0 : index
    %c0_10 = arith.constant 0 : index
    %8 = vector.load %arg9[%c0_8, %c0_9, %c0_10] : memref<4x8x1xf32, #tpu.memory_space<vmem>>, vector<4x8x1xf32>
    %cst_11 = arith.constant dense<0xFF800000> : vector<4x8xf32>
    %9 = vector.multi_reduction <maximumf>, %7, %cst_11 [2] : vector<4x8x8xf32> to vector<4x8xf32>
    %10 = vector.shape_cast %9 : vector<4x8xf32> to vector<4x8x1xf32>
    %11 = arith.maximumf %8, %10 : vector<4x8x1xf32>
    %12 = arith.subf %8, %11 : vector<4x8x1xf32>
    %13 = math.exp %12 : vector<4x8x1xf32>
    %14 = vector.broadcast %11 : vector<4x8x1xf32> to vector<4x8x8xf32>
    %15 = arith.subf %7, %14 : vector<4x8x8xf32>
    %16 = math.exp %15 : vector<4x8x8xf32>
    %c0_12 = arith.constant 0 : index
    %c0_13 = arith.constant 0 : index
    %c0_14 = arith.constant 0 : index
    %17 = vector.load %arg10[%c0_12, %c0_13, %c0_14] : memref<4x8x1xf32, #tpu.memory_space<vmem>>, vector<4x8x1xf32>
    %18 = arith.mulf %13, %17 : vector<4x8x1xf32>
    %cst_15 = arith.constant dense<0.000000e+00> : vector<4x8xf32>
    %19 = vector.multi_reduction <add>, %16, %cst_15 [2] : vector<4x8x8xf32> to vector<4x8xf32>
    %20 = vector.shape_cast %19 : vector<4x8xf32> to vector<4x8x1xf32>
    %21 = arith.addf %18, %20 : vector<4x8x1xf32>
    %c0_16 = arith.constant 0 : index
    %c0_17 = arith.constant 0 : index
    %c0_18 = arith.constant 0 : index
    %22 = vector.load %arg10[%c0_16, %c0_17, %c0_18] : memref<4x8x1xf32, #tpu.memory_space<vmem>>, vector<4x8x1xf32>
    tpu.vector_store %arg10[%c0_16, %c0_17, %c0_18], %21 {strides = array<i32>} : memref<4x8x1xf32, #tpu.memory_space<vmem>>, vector<4x8x1xf32>,
    %c0_19 = arith.constant 0 : index
    %c0_20 = arith.constant 0 : index
    %c0_21 = arith.constant 0 : index
    %23 = vector.load %arg11[%c0_19, %c0_20, %c0_21] : memref<4x8x8xf32, #tpu.memory_space<vmem>>, vector<4x8x8xf32>
    %24 = vector.broadcast %13 : vector<4x8x1xf32> to vector<4x8x8xf32>
    %25 = arith.mulf %24, %23 : vector<4x8x8xf32>
    %c0_22 = arith.constant 0 : index
    %c0_23 = arith.constant 0 : index
    %c0_24 = arith.constant 0 : index
    %c0_25 = arith.constant 0 : index
    %26 = vector.load %arg5[%c0_22, %c0_23, %c0_24, %c0_25] : memref<1x4x8x8xf32, #tpu.memory_space<vmem>>, vector<1x4x8x8xf32>
    %27 = vector.shape_cast %26 : vector<1x4x8x8xf32> to vector<4x8x8xf32>
    "tpu.trace_start"() <{level = 10 : i32, message = "hqk,hkd->hqd"}> : () -> ()
    %cst_26 = arith.constant dense<0.000000e+00> : vector<4x8x8xf32>
    %28 = tpu.matmul %16, %27, %cst_26 {dimension_numbers = #tpu.dot_dimension_numbers<[2], [1], [1], [2], [0, 0, 0, 1, 1, 2], [0], [0]>} : vector<4x8x8xf32>, vector<4x8x8xf32>, vector<4x8x8xf32> -> vector<4x8x8xf32>
    "tpu.trace_stop"() : () -> ()
    %29 = arith.addf %25, %28 : vector<4x8x8xf32>
    %c0_27 = arith.constant 0 : index
    %c0_28 = arith.constant 0 : index
    %c0_29 = arith.constant 0 : index
    %30 = vector.load %arg11[%c0_27, %c0_28, %c0_29] : memref<4x8x8xf32, #tpu.memory_space<vmem>>, vector<4x8x8xf32>
    tpu.vector_store %arg11[%c0_27, %c0_28, %c0_29], %29 {strides = array<i32>} : memref<4x8x8xf32, #tpu.memory_space<vmem>>, vector<4x8x8xf32>,
    %c0_30 = arith.constant 0 : index
    %c0_31 = arith.constant 0 : index
    %c0_32 = arith.constant 0 : index
    %31 = vector.load %arg9[%c0_30, %c0_31, %c0_32] : memref<4x8x1xf32, #tpu.memory_space<vmem>>, vector<4x8x1xf32>
    tpu.vector_store %arg9[%c0_30, %c0_31, %c0_32], %11 {strides = array<i32>} : memref<4x8x1xf32, #tpu.memory_space<vmem>>, vector<4x8x1xf32>,
    %c0_i32_33 = arith.constant 0 : i32
    %32 = arith.cmpi eq, %arg2, %c0_i32_33 : i32
    %33 = arith.extui %32 : i1 to i32
    %c0_i32_34 = arith.constant 0 : i32
    %34 = arith.cmpi ne, %33, %c0_i32_34 : i32
    scf.if %34 {
      %c0_35 = arith.constant 0 : index
      %c0_36 = arith.constant 0 : index
      %c0_37 = arith.constant 0 : index
      %35 = vector.load %arg11[%c0_35, %c0_36, %c0_37] : memref<4x8x8xf32, #tpu.memory_space<vmem>>, vector<4x8x8xf32>
      %c0_38 = arith.constant 0 : index
      %c0_39 = arith.constant 0 : index
      %c0_40 = arith.constant 0 : index
      %36 = vector.load %arg10[%c0_38, %c0_39, %c0_40] : memref<4x8x1xf32, #tpu.memory_space<vmem>>, vector<4x8x1xf32>
      %37 = vector.broadcast %36 : vector<4x8x1xf32> to vector<4x8x8xf32>
      %38 = arith.divf %35, %37 : vector<4x8x8xf32>
      %cst_41 = arith.constant 0.000000e+00 : f32
      %39 = vector.broadcast %cst_41 : f32 to vector<8x32xf32>
      %40 = vector.extract_strided_slice %38 {offsets = [0, 0, 0], sizes = [1, 8, 8], strides = [1, 1, 1]} : vector<4x8x8xf32> to vector<1x8x8xf32>
      %41 = vector.shape_cast %40 : vector<1x8x8xf32> to vector<8x8xf32>
      %c0_42 = arith.constant 0 : index
      %c0_43 = arith.constant 0 : index
      %c0_44 = arith.constant 0 : index
      %42 = vector.load %arg6[%c0_42, %c0_43, %c0_44] : memref<4x8x32xf32, #tpu.memory_space<vmem>>, vector<1x8x32xf32>
      %43 = vector.shape_cast %42 : vector<1x8x32xf32> to vector<8x32xf32>
      %cst_45 = arith.constant dense<0.000000e+00> : vector<8x32xf32>
      %44 = tpu.matmul %41, %43, %cst_45 {dimension_numbers = #tpu.dot_dimension_numbers<[1], [0], [0], [1], [0, 0, 1, 1], [], []>} : vector<8x8xf32>, vector<8x32xf32>, vector<8x32xf32> -> vector<8x32xf32>
      %45 = arith.addf %39, %44 : vector<8x32xf32>
      %46 = vector.extract_strided_slice %38 {offsets = [1, 0, 0], sizes = [1, 8, 8], strides = [1, 1, 1]} : vector<4x8x8xf32> to vector<1x8x8xf32>
      %47 = vector.shape_cast %46 : vector<1x8x8xf32> to vector<8x8xf32>
      %c1 = arith.constant 1 : index
      %c0_46 = arith.constant 0 : index
      %c0_47 = arith.constant 0 : index
      %48 = vector.load %arg6[%c1, %c0_46, %c0_47] : memref<4x8x32xf32, #tpu.memory_space<vmem>>, vector<1x8x32xf32>
      %49 = vector.shape_cast %48 : vector<1x8x32xf32> to vector<8x32xf32>
      %cst_48 = arith.constant dense<0.000000e+00> : vector<8x32xf32>
      %50 = tpu.matmul %47, %49, %cst_48 {dimension_numbers = #tpu.dot_dimension_numbers<[1], [0], [0], [1], [0, 0, 1, 1], [], []>} : vector<8x8xf32>, vector<8x32xf32>, vector<8x32xf32> -> vector<8x32xf32>
      %51 = arith.addf %45, %50 : vector<8x32xf32>
      %52 = vector.extract_strided_slice %38 {offsets = [2, 0, 0], sizes = [1, 8, 8], strides = [1, 1, 1]} : vector<4x8x8xf32> to vector<1x8x8xf32>
      %53 = vector.shape_cast %52 : vector<1x8x8xf32> to vector<8x8xf32>
      %c2 = arith.constant 2 : index
      %c0_49 = arith.constant 0 : index
      %c0_50 = arith.constant 0 : index
      %54 = vector.load %arg6[%c2, %c0_49, %c0_50] : memref<4x8x32xf32, #tpu.memory_space<vmem>>, vector<1x8x32xf32>
      %55 = vector.shape_cast %54 : vector<1x8x32xf32> to vector<8x32xf32>
      %cst_51 = arith.constant dense<0.000000e+00> : vector<8x32xf32>
      %56 = tpu.matmul %53, %55, %cst_51 {dimension_numbers = #tpu.dot_dimension_numbers<[1], [0], [0], [1], [0, 0, 1, 1], [], []>} : vector<8x8xf32>, vector<8x32xf32>, vector<8x32xf32> -> vector<8x32xf32>
      %57 = arith.addf %51, %56 : vector<8x32xf32>
      %58 = vector.extract_strided_slice %38 {offsets = [3, 0, 0], sizes = [1, 8, 8], strides = [1, 1, 1]} : vector<4x8x8xf32> to vector<1x8x8xf32>
      %59 = vector.shape_cast %58 : vector<1x8x8xf32> to vector<8x8xf32>
      %c3 = arith.constant 3 : index
      %c0_52 = arith.constant 0 : index
      %c0_53 = arith.constant 0 : index
      %60 = vector.load %arg6[%c3, %c0_52, %c0_53] : memref<4x8x32xf32, #tpu.memory_space<vmem>>, vector<1x8x32xf32>
      %61 = vector.shape_cast %60 : vector<1x8x32xf32> to vector<8x32xf32>
      %cst_54 = arith.constant dense<0.000000e+00> : vector<8x32xf32>
      %62 = tpu.matmul %59, %61, %cst_54 {dimension_numbers = #tpu.dot_dimension_numbers<[1], [0], [0], [1], [0, 0, 1, 1], [], []>} : vector<8x8xf32>, vector<8x32xf32>, vector<8x32xf32> -> vector<8x32xf32>
      %63 = arith.addf %57, %62 : vector<8x32xf32>
      %c0_55 = arith.constant 0 : index
      %c0_56 = arith.constant 0 : index
      %64 = vector.load %arg7[%c0_55, %c0_56] : memref<1x32xf32, #tpu.memory_space<vmem>>, vector<1x32xf32>
      %65 = vector.broadcast %64 : vector<1x32xf32> to vector<8x32xf32>
      %66 = arith.addf %63, %65 : vector<8x32xf32>
      %c0_57 = arith.constant 0 : index
      %c0_58 = arith.constant 0 : index
      %c0_59 = arith.constant 0 : index
      %67 = vector.load %arg8[%c0_57, %c0_58, %c0_59] : memref<1x8x32xf32, #tpu.memory_space<vmem>>, vector<1x8x32xf32>
      %68 = vector.shape_cast %67 : vector<1x8x32xf32> to vector<8x32xf32>
      %69 = vector.shape_cast %66 : vector<8x32xf32> to vector<1x8x32xf32>
      tpu.vector_store %arg8[%c0_57, %c0_58, %c0_59], %69 {strides = array<i32>} : memref<1x8x32xf32, #tpu.memory_space<vmem>>, vector<1x8x32xf32>,
    } else {
    }
    return
  }
  func.func @transform_0(%arg0: i32, %arg1: i32, %arg2: i32) -> (i32, i32, i32, i32) {
    %c0_i32 = arith.constant 0 : i32
    %c0_i32_0 = arith.constant 0 : i32
    %c0_i32_1 = arith.constant 0 : i32
    return %arg0, %c0_i32, %arg1, %c0_i32_0 : i32, i32, i32, i32
  }
  func.func @transform_1(%arg0: i32, %arg1: i32, %arg2: i32) -> (i32, i32, i32, i32) {
    %c0_i32 = arith.constant 0 : i32
    %c0_i32_0 = arith.constant 0 : i32
    %c0_i32_1 = arith.constant 0 : i32
    return %arg0, %c0_i32, %c0_i32_0, %arg2 : i32, i32, i32, i32
  }
  func.func @transform_2(%arg0: i32, %arg1: i32, %arg2: i32) -> (i32, i32, i32, i32) {
    %c0_i32 = arith.constant 0 : i32
    %c0_i32_0 = arith.constant 0 : i32
    %c0_i32_1 = arith.constant 0 : i32
    return %arg0, %c0_i32, %arg2, %c0_i32_0 : i32, i32, i32, i32
  }
  func.func @transform_3(%arg0: i32, %arg1: i32, %arg2: i32) -> (i32, i32, i32) {
    %c0_i32 = arith.constant 0 : i32
    %c0_i32_0 = arith.constant 0 : i32
    %c0_i32_1 = arith.constant 0 : i32
    %c0_i32_2 = arith.constant 0 : i32
    return %c0_i32, %c0_i32_0, %c0_i32_1 : i32, i32, i32
  }
  func.func @transform_4(%arg0: i32, %arg1: i32, %arg2: i32) -> (i32, i32) {
    %c0_i32 = arith.constant 0 : i32
    %c0_i32_0 = arith.constant 0 : i32
    %c0_i32_1 = arith.constant 0 : i32
    return %c0_i32, %c0_i32_0 : i32, i32
  }
  func.func @transform_5(%arg0: i32, %arg1: i32, %arg2: i32) -> (i32, i32, i32) {
    %c0_i32 = arith.constant 0 : i32
    %c0_i32_0 = arith.constant 0 : i32
    return %arg0, %arg1, %c0_i32 : i32, i32, i32
  }
}

</mosaic_0001>

<llo_original>
// kernel: mul.9
$region0: #{mul.9}
  #allocation0 [shape = 's32[1]{0}', space=sflag, size = 0x4, scoped, tag = 'scoped memory for mul.9']
  %s0 = inlined_call_operand.vmem [shape: f32[96], index: 0, kind: input, shape index: {}]
  %s1 = inlined_call_operand.vmem [shape: f32[96], index: 1, kind: input, shape index: {}]
  %s2 = inlined_call_operand.vmem [shape: f32[96], index: 2, kind: output, shape index: {}]
  %v3 = vld [vmem:[%s0] sm:$0x1]
  %v4 = vld [vmem:[%s1] sm:$0x1]
  %5 = xla_tuple %v3, %v4
  %6 = xla_tuple %5
  %v7 = vmul.f32 %v3, %v4
  %8 = xla_tuple %v7
  %9 = vst [vmem:[%s2] sm:$0x1] %v7

// kernel: efficient_self_attention.1
$region0: #{efficient_self_attention.1}
  #allocation0 [shape = 'u32[]', space=smem, size = 0x4, offset = 0x4, fixed_abs, tag = 'smem constant byte address 0x4 - core index']
  #allocation1 [shape = 'u32[144,128]{1,0:T(1,128)}', space=vmem, size = 0x12000, scoped, tag = 'internal scratch']
  #allocation2 [shape = 'f32[4,8,1]{2,1,0:T(8,128)}', space=vmem, size = 0x4000, scoped, tag = 'scratch operand']
  #allocation3 [shape = 'f32[4,8,1]{2,1,0:T(8,128)}', space=vmem, size = 0x4000, scoped, tag = 'scratch operand']
  #allocation4 [shape = 'f32[4,8,8]{2,1,0:T(8,128)}', space=vmem, size = 0x4000, scoped, tag = 'scratch operand']
  %s0 = inlined_call_operand.vmem [shape: f32[2,4,8,8], index: 0, kind: input, shape index: {}]
  %s1 = inlined_call_operand.vmem [shape: f32[2,4,8,8], index: 1, kind: input, shape index: {}]
  %s2 = inlined_call_operand.vmem [shape: f32[2,4,8,8], index: 2, kind: input, shape index: {}]
  %s3 = inlined_call_operand.vmem [shape: f32[4,8,32], index: 3, kind: input, shape index: {}]
  %s4 = inlined_call_operand.vmem [shape: f32[1,32], index: 4, kind: input, shape index: {}]
  %s5 = inlined_call_operand.hbm [shape: f32[2,8,32], index: 5, kind: output, shape index: {}]
  %s6 = sld [smem:[#allocation0]]
  $region61: #{efficient_self_attention.1} parent=0
    _
  %s8 = ssub.s32 1, %s6
  %s9 = scalar_select 0, %s8, %s6
  $region1: #{efficient_self_attention.1} parent=0
    #allocation5 [shape = 'u8[8192]{0}', space=vmem, size = 0x2000, scoped, tag = 'output window, operand 0']
    #allocation6 [shape = 's32[2]{0}', space=sflag, size = 0x8, scoped, tag = 'scoped memory for efficient_self_attention.1']
    %10 = vsyncpa [#allocation6], 0
    %s11 = scalar_lea.sflag [#allocation6], 1
    %12 = vsyncpa %s11, 0
    loop: start=0, step=1, limit=4
    $region2: #{efficient_self_attention.1} parent=1 // loop_pre_header
      _
    $region3: #{efficient_self_attention.1} parent=1 // loop_header
      %s14 = sphi 0, %s18
      %p15 = scmp.ge.s32.totalorder %s14, 4
      %s21 = sphi 0, %s40
      %s22 = sphi 0, %s36
      %s23 = sphi 0, %s32
      %s24 = sphi 0, %s21
      %s25 = sphi 0, %s22
      %s26 = sphi 0, %s23
      %s27 = sphi 0, %s24
      %s28 = sphi 0, %s25
      %s29 = sphi 0, %s26
      %s45 = sphi 0, %s47
      %s48 = sphi 0, %s45
      %s49 = sphi 0, %s48
      %s65 = sphi 0, %s49
      %s73 = sphi 0, %s75
      %s76 = sphi 0, %s73
      %s77 = sphi 0, %s76
      %s93 = sphi 0, %s77
      %s101 = sphi 0, %s103
      %s104 = sphi 0, %s101
      %s105 = sphi 0, %s104
      %s121 = sphi 0, %s105
      %s125 = sphi 0, %s125
      %s127 = sphi 0, %s125
      %s128 = sphi 0, %s127
      %s142 = sphi 0, %s128
      %s146 = sphi 0, %s146
      %s148 = sphi 0, %s146
      %s149 = sphi 0, %s148
      %s163 = sphi 0, %s149
      %s171 = sphi 0, %s173
      %s174 = sphi 0, %s171
      %s175 = sphi 0, %s174
      %s191 = sphi 0, %s175
    $region4: #{efficient_self_attention.1} parent=1 // loop_header_branch
      %17 = sbr.rel (%p15) target = $region8
    $region5: #{efficient_self_attention.1} parent=1 // loop_body
      %s19 = ssub.s32 %s14, 1
      %s20 = ssub.s32 %s14, 2
      %s30 = sadd.s32 1, %s23
      %p31 = scmp.ge.s32.totalorder %s30, 1
      %s32 = scalar_select %p31, 0, %s30
      %s33 = sadd.s32 1, %s22
      %s34 = scalar_select %p31, %s33, %s22
      %p35 = scmp.ge.s32.totalorder %s34, 1
      %s36 = scalar_select %p35, 0, %s34
      %s37 = sadd.s32 1, %s21
      %s38 = scalar_select %p35, %s37, %s21
      %p39 = scmp.ge.s32.totalorder %s38, 2
      %s40 = scalar_select %p39, 0, %s38
      %s41 = ssub.s32 %s21, %s40
      %s42 = ssub.s32 %s22, %s36
      %s43 = sor.u32 %s41, %s42
      %p44 = scmp.eq.s32.totalorder %s43, 0
      %s46 = sadd.s32 %s45, 1
      %s47 = scalar_select %p44, %s45, %s46
      %p50 = pneg %p44
      %p51 = scmp.eq.s32.totalorder %s14, 1
      %p52 = por %p50, %p51
      %p53 = scmp.ne.s32.totalorder %s45, %s48
      %p54 = scmp.eq.s32.totalorder %s14, 0
      %p55 = por %p53, %p54
      %p56 = scmp.ne.s32.totalorder %s45, %s48
      %p57 = scmp.eq.s32.totalorder %s19, 1
      %p58 = por %p56, %p57
      %p59 = scmp.ne.s32.totalorder %s48, %s49
      %p60 = scmp.eq.s32.totalorder %s19, 0
      %p61 = por %p59, %p60
      %p62 = scmp.ne.s32.totalorder %s48, %s49
      %p63 = scmp.eq.s32.totalorder %s20, 1
      %p64 = por %p62, %p63
      %p66 = scmp.ne.s32.totalorder %s49, %s65
      %p67 = scmp.eq.s32.totalorder %s20, 0
      %p68 = por %p66, %p67
      %s69 = ssub.s32 %s21, %s40
      %s70 = ssub.s32 %s23, %s32
      %s71 = sor.u32 %s69, %s70
      %p72 = scmp.eq.s32.totalorder %s71, 0
      %s74 = sadd.s32 %s73, 1
      %s75 = scalar_select %p72, %s73, %s74
      %p78 = pneg %p72
      %p79 = scmp.eq.s32.totalorder %s14, 1
      %p80 = por %p78, %p79
      %p81 = scmp.ne.s32.totalorder %s73, %s76
      %p82 = scmp.eq.s32.totalorder %s14, 0
      %p83 = por %p81, %p82
      %p84 = scmp.ne.s32.totalorder %s73, %s76
      %p85 = scmp.eq.s32.totalorder %s19, 1
      %p86 = por %p84, %p85
      %p87 = scmp.ne.s32.totalorder %s76, %s77
      %p88 = scmp.eq.s32.totalorder %s19, 0
      %p89 = por %p87, %p88
      %p90 = scmp.ne.s32.totalorder %s76, %s77
      %p91 = scmp.eq.s32.totalorder %s20, 1
      %p92 = por %p90, %p91
      %p94 = scmp.ne.s32.totalorder %s77, %s93
      %p95 = scmp.eq.s32.totalorder %s20, 0
      %p96 = por %p94, %p95
      %s97 = ssub.s32 %s21, %s40
      %s98 = ssub.s32 %s23, %s32
      %s99 = sor.u32 %s97, %s98
      %p100 = scmp.eq.s32.totalorder %s99, 0
      %s102 = sadd.s32 %s101, 1
      %s103 = scalar_select %p100, %s101, %s102
      %p106 = pneg %p100
      %p107 = scmp.eq.s32.totalorder %s14, 1
      %p108 = por %p106, %p107
      %p109 = scmp.ne.s32.totalorder %s101, %s104
      %p110 = scmp.eq.s32.totalorder %s14, 0
      %p111 = por %p109, %p110
      %p112 = scmp.ne.s32.totalorder %s101, %s104
      %p113 = scmp.eq.s32.totalorder %s19, 1
      %p114 = por %p112, %p113
      %p115 = scmp.ne.s32.totalorder %s104, %s105
      %p116 = scmp.eq.s32.totalorder %s19, 0
      %p117 = por %p115, %p116
      %p118 = scmp.ne.s32.totalorder %s104, %s105
      %p119 = scmp.eq.s32.totalorder %s20, 1
      %p120 = por %p118, %p119
      %p122 = scmp.ne.s32.totalorder %s105, %s121
      %p123 = scmp.eq.s32.totalorder %s20, 0
      %p124 = por %p122, %p123
      %s126 = sadd.s32 %s125, 1
      %p129 = scmp.eq.s32.totalorder %s14, 1
      %p130 = scmp.ne.s32.totalorder %s125, %s127
      %p131 = scmp.eq.s32.totalorder %s14, 0
      %p132 = por %p130, %p131
      %p133 = scmp.ne.s32.totalorder %s125, %s127
      %p134 = scmp.eq.s32.totalorder %s19, 1
      %p135 = por %p133, %p134
      %p136 = scmp.ne.s32.totalorder %s127, %s128
      %p137 = scmp.eq.s32.totalorder %s19, 0
      %p138 = por %p136, %p137
      %p139 = scmp.ne.s32.totalorder %s127, %s128
      %p140 = scmp.eq.s32.totalorder %s20, 1
      %p141 = por %p139, %p140
      %p143 = scmp.ne.s32.totalorder %s128, %s142
      %p144 = scmp.eq.s32.totalorder %s20, 0
      %p145 = por %p143, %p144
      %s147 = sadd.s32 %s146, 1
      %p150 = scmp.eq.s32.totalorder %s14, 1
      %p151 = scmp.ne.s32.totalorder %s146, %s148
      %p152 = scmp.eq.s32.totalorder %s14, 0
      %p153 = por %p151, %p152
      %p154 = scmp.ne.s32.totalorder %s146, %s148
      %p155 = scmp.eq.s32.totalorder %s19, 1
      %p156 = por %p154, %p155
      %p157 = scmp.ne.s32.totalorder %s148, %s149
      %p158 = scmp.eq.s32.totalorder %s19, 0
      %p159 = por %p157, %p158
      %p160 = scmp.ne.s32.totalorder %s148, %s149
      %p161 = scmp.eq.s32.totalorder %s20, 1
      %p162 = por %p160, %p161
      %p164 = scmp.ne.s32.totalorder %s149, %s163
      %p165 = scmp.eq.s32.totalorder %s20, 0
      %p166 = por %p164, %p165
      %s167 = ssub.s32 %s21, %s40
      %s168 = ssub.s32 %s22, %s36
      %s169 = sor.u32 %s167, %s168
      %p170 = scmp.eq.s32.totalorder %s169, 0
      %s172 = sadd.s32 %s171, 1
      %s173 = scalar_select %p170, %s171, %s172
      %p176 = pneg %p170
      %p177 = scmp.eq.s32.totalorder %s14, 1
      %p178 = por %p176, %p177
      %p179 = scmp.ne.s32.totalorder %s171, %s174
      %p180 = scmp.eq.s32.totalorder %s14, 0
      %p181 = por %p179, %p180
      %p182 = scmp.ne.s32.totalorder %s171, %s174
      %p183 = scmp.eq.s32.totalorder %s19, 1
      %p184 = por %p182, %p183
      %p185 = scmp.ne.s32.totalorder %s174, %s175
      %p186 = scmp.eq.s32.totalorder %s19, 0
      %p187 = por %p185, %p186
      %p188 = scmp.ne.s32.totalorder %s174, %s175
      %p189 = scmp.eq.s32.totalorder %s20, 1
      %p190 = por %p188, %p189
      %p192 = scmp.ne.s32.totalorder %s175, %s191
      %p193 = scmp.eq.s32.totalorder %s20, 0
      %p194 = por %p192, %p193
      %p195 = scmp.le.s32.totalorder 1, %s14
      %p196 = scmp.lt.s32.totalorder %s14, 3
      %p197 = pnand %p195, %p196
      %p198 = pneg %p197
      // Predicated region
      $region9: #{efficient_self_attention.1} parent=5 // pred_check
        _
      $region10: #{efficient_self_attention.1} parent=5 // pred_check_branch
        %200 = sbr.rel (%p197) target = $region12
      $region11: #{efficient_self_attention.1} parent=5 // pred_region
        %s201 = ssub.s32 %s14, 1
        // Predicated region
        $region13: #{efficient_self_attention.1} parent=11 // pred_check
          %p202 = pneg %p138
        $region14: #{efficient_self_attention.1} parent=11 // pred_check_branch
          %204 = sbr.rel (%p202) target = $region16
        $region15: #{efficient_self_attention.1} parent=11 // pred_region
          _
        $region16: #{efficient_self_attention.1} parent=11 // pred_fallthru
          _
        // Predicated region
        $region17: #{efficient_self_attention.1} parent=11 // pred_check
          %p205 = pneg %p159
        $region18: #{efficient_self_attention.1} parent=11 // pred_check_branch
          %207 = sbr.rel (%p205) target = $region20
        $region19: #{efficient_self_attention.1} parent=11 // pred_region
          _
        $region20: #{efficient_self_attention.1} parent=11 // pred_fallthru
          _
      $region12: #{efficient_self_attention.1} parent=5 // pred_fallthru
        _
      %p208 = scmp.lt.s32.totalorder %s14, 2
      // Predicated region
      $region21: #{efficient_self_attention.1} parent=5 // pred_check
        %p209 = pneg %p208
      $region22: #{efficient_self_attention.1} parent=5 // pred_check_branch
        %211 = sbr.rel (%p209) target = $region24
      $region23: #{efficient_self_attention.1} parent=5 // pred_region
        // Predicated region
        $region25: #{efficient_self_attention.1} parent=23 // pred_check
          %p212 = pneg %p55
        $region26: #{efficient_self_attention.1} parent=23 // pred_check_branch
          %214 = sbr.rel (%p212) target = $region28
        $region27: #{efficient_self_attention.1} parent=23 // pred_region
          %p215 = scmp.lt.s32.totalorder %s21, 1
          %s216 = scalar_select %p215, %s21, 1
          %p217 = scmp.lt.s32.totalorder %s22, 0
          %s218 = scalar_select %p217, %s22, 0
          %s219 = smul.addr %s216, 4
          %s220 = sadd.s32 %s218, %s219
          %s221 = smul.addr %s220, 8
          %s222 = scalar_lea.vmem %s0, %s221
        $region28: #{efficient_self_attention.1} parent=23 // pred_fallthru
          _
        // Predicated region
        $region29: #{efficient_self_attention.1} parent=23 // pred_check
          %p223 = pneg %p83
        $region30: #{efficient_self_attention.1} parent=23 // pred_check_branch
          %225 = sbr.rel (%p223) target = $region32
        $region31: #{efficient_self_attention.1} parent=23 // pred_region
          %p226 = scmp.lt.s32.totalorder %s21, 1
          %s227 = scalar_select %p226, %s21, 1
          %p228 = scmp.lt.s32.totalorder %s23, 0
          %s229 = scalar_select %p228, %s23, 0
          %s230 = smul.addr %s227, 4
          %s231 = sadd.s32 %s229, %s230
          %s232 = smul.addr %s231, 8
          %s233 = scalar_lea.vmem %s1, %s232
        $region32: #{efficient_self_attention.1} parent=23 // pred_fallthru
          _
        // Predicated region
        $region33: #{efficient_self_attention.1} parent=23 // pred_check
          %p234 = pneg %p111
        $region34: #{efficient_self_attention.1} parent=23 // pred_check_branch
          %236 = sbr.rel (%p234) target = $region36
        $region35: #{efficient_self_attention.1} parent=23 // pred_region
          %p237 = scmp.lt.s32.totalorder %s21, 1
          %s238 = scalar_select %p237, %s21, 1
          %p239 = scmp.lt.s32.totalorder %s23, 0
          %s240 = scalar_select %p239, %s23, 0
          %s241 = smul.addr %s238, 4
          %s242 = sadd.s32 %s240, %s241
          %s243 = smul.addr %s242, 8
          %s244 = scalar_lea.vmem %s2, %s243
        $region36: #{efficient_self_attention.1} parent=23 // pred_fallthru
          _
      $region24: #{efficient_self_attention.1} parent=5 // pred_fallthru
        _
      %p245 = scmp.le.s32.totalorder 1, %s14
      %p246 = scmp.lt.s32.totalorder %s14, 3
      %p247 = pnand %p245, %p246
      %p248 = pneg %p247
      // Predicated region
      $region37: #{efficient_self_attention.1} parent=5 // pred_check
        _
      $region38: #{efficient_self_attention.1} parent=5 // pred_check_branch
        %250 = sbr.rel (%p247) target = $region40
      $region39: #{efficient_self_attention.1} parent=5 // pred_region
        %s251 = ssub.s32 %s14, 1
        %p252 = scmp.lt.s32.totalorder %s24, 1
        %s253 = scalar_select %p252, %s24, 1
        %p254 = scmp.lt.s32.totalorder %s25, 0
        %s255 = scalar_select %p254, %s25, 0
        %s256 = smul.addr %s253, 4
        %s257 = sadd.s32 %s255, %s256
        %s258 = smul.addr %s257, 8
        %s259 = scalar_lea.vmem %s0, %s258
        %p260 = pneg %p61
        %p261 = pneg %p58
        %p262 = scmp.lt.s32.totalorder %s24, 1
        %s263 = scalar_select %p262, %s24, 1
        %p264 = scmp.lt.s32.totalorder %s26, 0
        %s265 = scalar_select %p264, %s26, 0
        %s266 = smul.addr %s263, 4
        %s267 = sadd.s32 %s265, %s266
        %s268 = smul.addr %s267, 8
        %s269 = scalar_lea.vmem %s1, %s268
        %p270 = pneg %p89
        %p271 = pneg %p86
        %p272 = scmp.lt.s32.totalorder %s24, 1
        %s273 = scalar_select %p272, %s24, 1
        %p274 = scmp.lt.s32.totalorder %s26, 0
        %s275 = scalar_select %p274, %s26, 0
        %s276 = smul.addr %s273, 4
        %s277 = sadd.s32 %s275, %s276
        %s278 = smul.addr %s277, 8
        %s279 = scalar_lea.vmem %s2, %s278
        %p280 = pneg %p117
        %p281 = pneg %p114
        %p282 = pneg %p138
        %p283 = pneg %p135
        %p284 = pneg %p159
        %p285 = pneg %p156
        %p286 = pneg %p187
        %p287 = pneg %p184
        %s288 = sand.u32 %s174, 1
        %s289 = scalar_lea.sflag [#allocation6], %s288
        %s290 = sand.u32 %s174, 1
        %s291 = smul.addr %s290, 8
        %s292 = scalar_lea.vmem [#allocation5], %s291
        %p293 = scmp.lt.s32.totalorder %s24, 1
        %s294 = scalar_select %p293, %s24, 1
        %p295 = scmp.lt.s32.totalorder %s25, 0
        %s296 = scalar_select %p295, %s25, 0
        %s297 = smul.addr %s294, 4
        %s298 = sadd.s32 %s296, %s297
        %s299 = smul.addr %s298, 8
        %s300 = scalar_lea.vmem %s0, %s299
        %p301 = scmp.lt.s32.totalorder %s24, 1
        %s302 = scalar_select %p301, %s24, 1
        %p303 = scmp.lt.s32.totalorder %s26, 0
        %s304 = scalar_select %p303, %s26, 0
        %s305 = smul.addr %s302, 4
        %s306 = sadd.s32 %s304, %s305
        %s307 = smul.addr %s306, 8
        %s308 = scalar_lea.vmem %s1, %s307
        %p309 = scmp.lt.s32.totalorder %s24, 1
        %s310 = scalar_select %p309, %s24, 1
        %p311 = scmp.lt.s32.totalorder %s26, 0
        %s312 = scalar_select %p311, %s26, 0
        %s313 = smul.addr %s310, 4
        %s314 = sadd.s32 %s312, %s313
        %s315 = smul.addr %s314, 8
        %s316 = scalar_lea.vmem %s2, %s315
        %p317 = scmp.eq.s32.totalorder %s26, 0
        // Predicated region
        $region41: #{efficient_self_attention.1} parent=39 // pred_check
          %p318 = pneg %p317
        $region42: #{efficient_self_attention.1} parent=39 // pred_check_branch
          %320 = sbr.rel (%p318) target = $region44
        $region43: #{efficient_self_attention.1} parent=39 // pred_region
          %vm321 = vcmask 7168
          %322 = vst.msk [vmem:[#allocation2] sm:$0xff] %vm321, -inf
          %323 = vst.msk [vmem:[#allocation2 + $0x8] sm:$0xff] %vm321, -inf
          %324 = vst.msk [vmem:[#allocation2 + $0x10] sm:$0xff] %vm321, -inf
          %325 = vst.msk [vmem:[#allocation2 + $0x18] sm:$0xff] %vm321, -inf
          %326 = vst.msk [vmem:[#allocation3] sm:$0xff] %vm321, 0.0
          %327 = vst.msk [vmem:[#allocation3 + $0x8] sm:$0xff] %vm321, 0.0
          %328 = vst.msk [vmem:[#allocation3 + $0x10] sm:$0xff] %vm321, 0.0
          %329 = vst.msk [vmem:[#allocation3 + $0x18] sm:$0xff] %vm321, 0.0
          %vm330 = vcmask 64512
          %331 = vst.msk [vmem:[#allocation4] sm:$0xff] %vm330, 0.0
          %332 = vst.msk [vmem:[#allocation4 + $0x8] sm:$0xff] %vm330, 0.0
          %333 = vst.msk [vmem:[#allocation4 + $0x10] sm:$0xff] %vm330, 0.0
          %334 = vst.msk [vmem:[#allocation4 + $0x18] sm:$0xff] %vm330, 0.0
        $region44: #{efficient_self_attention.1} parent=39 // pred_fallthru
          _
        %v335 = vld [vmem:[%s300] sm:$0xff]
        %v336 = vld [vmem:[%s300 + $0x8] sm:$0xff]
        %v337 = vld [vmem:[%s300 + $0x10] sm:$0xff]
        %v338 = vld [vmem:[%s300 + $0x18] sm:$0xff]
        %v339 = vld [vmem:[%s308] sm:$0xff]
        %v340 = vld [vmem:[%s308 + $0x8] sm:$0xff]
        %v341 = vld [vmem:[%s308 + $0x10] sm:$0xff]
        %v342 = vld [vmem:[%s308 + $0x18] sm:$0xff]
        %vm343 = vcmask 64512
        %v345 = vsel %vm343, %v335, 0
        %347 = vmatprep.subr.mxu0 0.0
        %348 = vmatpush1.msra.mxu0 0.0
        %349 = vmatprep.subr.mxu0 0.0
        %350 = vmatpush1.msra.mxu0 0.0
        %351 = vmatprep.subr.mxu0 0.0
        %352 = vmatpush1.msra.mxu0 0.0
        %353 = vmatprep.subr.mxu0 0.0
        %354 = vmatpush1.msra.mxu0 0.0
        %355 = vmatprep.subr.mxu0 0.0
        %356 = vmatpush1.msra.mxu0 0.0
        %357 = vmatprep.subr.mxu0 0.0
        %358 = vmatpush1.msra.mxu0 0.0
        %359 = vmatprep.subr.mxu0 0.0
        %360 = vmatpush1.msra.mxu0 0.0
        %361 = vmatprep.subr.mxu0 0.0
        %362 = vmatpush1.msra.mxu0 0.0
        %363 = vmatprep.subr.mxu0 0.0
        %364 = vmatpush1.msra.mxu0 0.0
        %365 = vmatprep.subr.mxu0 0.0
        %366 = vmatpush1.msra.mxu0 0.0
        %367 = vmatprep.subr.mxu0 0.0
        %368 = vmatpush1.msra.mxu0 0.0
        %369 = vmatprep.subr.mxu0 0.0
        %370 = vmatpush1.msra.mxu0 0.0
        %371 = vmatprep.subr.mxu0 0.0
        %372 = vmatpush1.msra.mxu0 0.0
        %373 = vmatprep.subr.mxu0 0.0
        %374 = vmatpush1.msra.mxu0 0.0
        %375 = vmatprep.subr.mxu0 0.0
        %376 = vmatpush1.msra.mxu0 0.0
        %377 = vmatprep.subr.mxu0 0.0
        %378 = vmatpush1.msra.mxu0 %v339
        %379 = vmatprep.subr.mxu0 0.0
        %380 = vmatpush2.msra.mxu0 0.0
        %381 = vmatprep.subr.mxu0 0.0
        %382 = vmatpush2.msra.mxu0 0.0
        %383 = vmatprep.subr.mxu0 0.0
        %384 = vmatpush2.msra.mxu0 0.0
        %385 = vmatprep.subr.mxu0 0.0
        %386 = vmatpush2.msra.mxu0 0.0
        %387 = vmatprep.subr.mxu0 0.0
        %388 = vmatpush2.msra.mxu0 0.0
        %389 = vmatprep.subr.mxu0 0.0
        %390 = vmatpush2.msra.mxu0 0.0
        %391 = vmatprep.subr.mxu0 0.0
        %392 = vmatpush2.msra.mxu0 0.0
        %393 = vmatprep.subr.mxu0 0.0
        %394 = vmatpush2.msra.mxu0 0.0
        %395 = vmatprep.subr.mxu0 0.0
        %396 = vmatpush2.msra.mxu0 0.0
        %397 = vmatprep.subr.mxu0 0.0
        %398 = vmatpush2.msra.mxu0 0.0
        %399 = vmatprep.subr.mxu0 0.0
        %400 = vmatpush2.msra.mxu0 0.0
        %401 = vmatprep.subr.mxu0 0.0
        %402 = vmatpush2.msra.mxu0 0.0
        %403 = vmatprep.subr.mxu0 0.0
        %404 = vmatpush2.msra.mxu0 0.0
        %405 = vmatprep.subr.mxu0 0.0
        %406 = vmatpush2.msra.mxu0 0.0
        %407 = vmatprep.subr.mxu0 0.0
        %408 = vmatpush2.msra.mxu0 0.0
        %409 = vmatprep.subr.mxu0 0.0
        %410 = vmatpush2.msra.mxu0 0.0
        %411 = vmatprep.mubr.f32.mxu0 0.0
        %412 = vmatmul.mubr.f32.gmra.mxu0 %v345
        %v413 = vpop.f32.mrf.mxu0
        %v414 = vadd.f32 0.0, %v413
        %v415 = vpop.f32.mrf.mxu0
        %416 = vdwg.mxu0
        %v418 = vsel %vm343, %v336, 0
        %420 = vmatprep.subr.mxu0 0.0
        %421 = vmatpush1.msra.mxu0 0.0
        %422 = vmatprep.subr.mxu0 0.0
        %423 = vmatpush1.msra.mxu0 0.0
        %424 = vmatprep.subr.mxu0 0.0
        %425 = vmatpush1.msra.mxu0 0.0
        %426 = vmatprep.subr.mxu0 0.0
        %427 = vmatpush1.msra.mxu0 0.0
        %428 = vmatprep.subr.mxu0 0.0
        %429 = vmatpush1.msra.mxu0 0.0
        %430 = vmatprep.subr.mxu0 0.0
        %431 = vmatpush1.msra.mxu0 0.0
        %432 = vmatprep.subr.mxu0 0.0
        %433 = vmatpush1.msra.mxu0 0.0
        %434 = vmatprep.subr.mxu0 0.0
        %435 = vmatpush1.msra.mxu0 0.0
        %436 = vmatprep.subr.mxu0 0.0
        %437 = vmatpush1.msra.mxu0 0.0
        %438 = vmatprep.subr.mxu0 0.0
        %439 = vmatpush1.msra.mxu0 0.0
        %440 = vmatprep.subr.mxu0 0.0
        %441 = vmatpush1.msra.mxu0 0.0
        %442 = vmatprep.subr.mxu0 0.0
        %443 = vmatpush1.msra.mxu0 0.0
        %444 = vmatprep.subr.mxu0 0.0
        %445 = vmatpush1.msra.mxu0 0.0
        %446 = vmatprep.subr.mxu0 0.0
        %447 = vmatpush1.msra.mxu0 0.0
        %448 = vmatprep.subr.mxu0 0.0
        %449 = vmatpush1.msra.mxu0 0.0
        %450 = vmatprep.subr.mxu0 0.0
        %451 = vmatpush1.msra.mxu0 %v340
        %452 = vmatprep.subr.mxu0 0.0
        %453 = vmatpush2.msra.mxu0 0.0
        %454 = vmatprep.subr.mxu0 0.0
        %455 = vmatpush2.msra.mxu0 0.0
        %456 = vmatprep.subr.mxu0 0.0
        %457 = vmatpush2.msra.mxu0 0.0
        %458 = vmatprep.subr.mxu0 0.0
        %459 = vmatpush2.msra.mxu0 0.0
        %460 = vmatprep.subr.mxu0 0.0
        %461 = vmatpush2.msra.mxu0 0.0
        %462 = vmatprep.subr.mxu0 0.0
        %463 = vmatpush2.msra.mxu0 0.0
        %464 = vmatprep.subr.mxu0 0.0
        %465 = vmatpush2.msra.mxu0 0.0
        %466 = vmatprep.subr.mxu0 0.0
        %467 = vmatpush2.msra.mxu0 0.0
        %468 = vmatprep.subr.mxu0 0.0
        %469 = vmatpush2.msra.mxu0 0.0
        %470 = vmatprep.subr.mxu0 0.0
        %471 = vmatpush2.msra.mxu0 0.0
        %472 = vmatprep.subr.mxu0 0.0
        %473 = vmatpush2.msra.mxu0 0.0
        %474 = vmatprep.subr.mxu0 0.0
        %475 = vmatpush2.msra.mxu0 0.0
        %476 = vmatprep.subr.mxu0 0.0
        %477 = vmatpush2.msra.mxu0 0.0
        %478 = vmatprep.subr.mxu0 0.0
        %479 = vmatpush2.msra.mxu0 0.0
        %480 = vmatprep.subr.mxu0 0.0
        %481 = vmatpush2.msra.mxu0 0.0
        %482 = vmatprep.subr.mxu0 0.0
        %483 = vmatpush2.msra.mxu0 0.0
        %484 = vmatprep.mubr.f32.mxu0 0.0
        %485 = vmatmul.mubr.f32.gmra.mxu0 %v418
        %v486 = vpop.f32.mrf.mxu0
        %v487 = vadd.f32 0.0, %v486
        %v488 = vpop.f32.mrf.mxu0
        %489 = vdwg.mxu0
        %v491 = vsel %vm343, %v337, 0
        %493 = vmatprep.subr.mxu0 0.0
        %494 = vmatpush1.msra.mxu0 0.0
        %495 = vmatprep.subr.mxu0 0.0
        %496 = vmatpush1.msra.mxu0 0.0
        %497 = vmatprep.subr.mxu0 0.0
        %498 = vmatpush1.msra.mxu0 0.0
        %499 = vmatprep.subr.mxu0 0.0
        %500 = vmatpush1.msra.mxu0 0.0
        %501 = vmatprep.subr.mxu0 0.0
        %502 = vmatpush1.msra.mxu0 0.0
        %503 = vmatprep.subr.mxu0 0.0
        %504 = vmatpush1.msra.mxu0 0.0
        %505 = vmatprep.subr.mxu0 0.0
        %506 = vmatpush1.msra.mxu0 0.0
        %507 = vmatprep.subr.mxu0 0.0
        %508 = vmatpush1.msra.mxu0 0.0
        %509 = vmatprep.subr.mxu0 0.0
        %510 = vmatpush1.msra.mxu0 0.0
        %511 = vmatprep.subr.mxu0 0.0
        %512 = vmatpush1.msra.mxu0 0.0
        %513 = vmatprep.subr.mxu0 0.0
        %514 = vmatpush1.msra.mxu0 0.0
        %515 = vmatprep.subr.mxu0 0.0
        %516 = vmatpush1.msra.mxu0 0.0
        %517 = vmatprep.subr.mxu0 0.0
        %518 = vmatpush1.msra.mxu0 0.0
        %519 = vmatprep.subr.mxu0 0.0
        %520 = vmatpush1.msra.mxu0 0.0
        %521 = vmatprep.subr.mxu0 0.0
        %522 = vmatpush1.msra.mxu0 0.0
        %523 = vmatprep.subr.mxu0 0.0
        %524 = vmatpush1.msra.mxu0 %v341
        %525 = vmatprep.subr.mxu0 0.0
        %526 = vmatpush2.msra.mxu0 0.0
        %527 = vmatprep.subr.mxu0 0.0
        %528 = vmatpush2.msra.mxu0 0.0
        %529 = vmatprep.subr.mxu0 0.0
        %530 = vmatpush2.msra.mxu0 0.0
        %531 = vmatprep.subr.mxu0 0.0
        %532 = vmatpush2.msra.mxu0 0.0
        %533 = vmatprep.subr.mxu0 0.0
        %534 = vmatpush2.msra.mxu0 0.0
        %535 = vmatprep.subr.mxu0 0.0
        %536 = vmatpush2.msra.mxu0 0.0
        %537 = vmatprep.subr.mxu0 0.0
        %538 = vmatpush2.msra.mxu0 0.0
        %539 = vmatprep.subr.mxu0 0.0
        %540 = vmatpush2.msra.mxu0 0.0
        %541 = vmatprep.subr.mxu0 0.0
        %542 = vmatpush2.msra.mxu0 0.0
        %543 = vmatprep.subr.mxu0 0.0
        %544 = vmatpush2.msra.mxu0 0.0
        %545 = vmatprep.subr.mxu0 0.0
        %546 = vmatpush2.msra.mxu0 0.0
        %547 = vmatprep.subr.mxu0 0.0
        %548 = vmatpush2.msra.mxu0 0.0
        %549 = vmatprep.subr.mxu0 0.0
        %550 = vmatpush2.msra.mxu0 0.0
        %551 = vmatprep.subr.mxu0 0.0
        %552 = vmatpush2.msra.mxu0 0.0
        %553 = vmatprep.subr.mxu0 0.0
        %554 = vmatpush2.msra.mxu0 0.0
        %555 = vmatprep.subr.mxu0 0.0
        %556 = vmatpush2.msra.mxu0 0.0
        %557 = vmatprep.mubr.f32.mxu0 0.0
        %558 = vmatmul.mubr.f32.gmra.mxu0 %v491
        %v559 = vpop.f32.mrf.mxu0
        %v560 = vadd.f32 0.0, %v559
        %v561 = vpop.f32.mrf.mxu0
        %562 = vdwg.mxu0
        %v564 = vsel %vm343, %v338, 0
        %566 = vmatprep.subr.mxu0 0.0
        %567 = vmatpush1.msra.mxu0 0.0
        %568 = vmatprep.subr.mxu0 0.0
        %569 = vmatpush1.msra.mxu0 0.0
        %570 = vmatprep.subr.mxu0 0.0
        %571 = vmatpush1.msra.mxu0 0.0
        %572 = vmatprep.subr.mxu0 0.0
        %573 = vmatpush1.msra.mxu0 0.0
        %574 = vmatprep.subr.mxu0 0.0
        %575 = vmatpush1.msra.mxu0 0.0
        %576 = vmatprep.subr.mxu0 0.0
        %577 = vmatpush1.msra.mxu0 0.0
        %578 = vmatprep.subr.mxu0 0.0
        %579 = vmatpush1.msra.mxu0 0.0
        %580 = vmatprep.subr.mxu0 0.0
        %581 = vmatpush1.msra.mxu0 0.0
        %582 = vmatprep.subr.mxu0 0.0
        %583 = vmatpush1.msra.mxu0 0.0
        %584 = vmatprep.subr.mxu0 0.0
        %585 = vmatpush1.msra.mxu0 0.0
        %586 = vmatprep.subr.mxu0 0.0
        %587 = vmatpush1.msra.mxu0 0.0
        %588 = vmatprep.subr.mxu0 0.0
        %589 = vmatpush1.msra.mxu0 0.0
        %590 = vmatprep.subr.mxu0 0.0
        %591 = vmatpush1.msra.mxu0 0.0
        %592 = vmatprep.subr.mxu0 0.0
        %593 = vmatpush1.msra.mxu0 0.0
        %594 = vmatprep.subr.mxu0 0.0
        %595 = vmatpush1.msra.mxu0 0.0
        %596 = vmatprep.subr.mxu0 0.0
        %597 = vmatpush1.msra.mxu0 %v342
        %598 = vmatprep.subr.mxu0 0.0
        %599 = vmatpush2.msra.mxu0 0.0
        %600 = vmatprep.subr.mxu0 0.0
        %601 = vmatpush2.msra.mxu0 0.0
        %602 = vmatprep.subr.mxu0 0.0
        %603 = vmatpush2.msra.mxu0 0.0
        %604 = vmatprep.subr.mxu0 0.0
        %605 = vmatpush2.msra.mxu0 0.0
        %606 = vmatprep.subr.mxu0 0.0
        %607 = vmatpush2.msra.mxu0 0.0
        %608 = vmatprep.subr.mxu0 0.0
        %609 = vmatpush2.msra.mxu0 0.0
        %610 = vmatprep.subr.mxu0 0.0
        %611 = vmatpush2.msra.mxu0 0.0
        %612 = vmatprep.subr.mxu0 0.0
        %613 = vmatpush2.msra.mxu0 0.0
        %614 = vmatprep.subr.mxu0 0.0
        %615 = vmatpush2.msra.mxu0 0.0
        %616 = vmatprep.subr.mxu0 0.0
        %617 = vmatpush2.msra.mxu0 0.0
        %618 = vmatprep.subr.mxu0 0.0
        %619 = vmatpush2.msra.mxu0 0.0
        %620 = vmatprep.subr.mxu0 0.0
        %621 = vmatpush2.msra.mxu0 0.0
        %622 = vmatprep.subr.mxu0 0.0
        %623 = vmatpush2.msra.mxu0 0.0
        %624 = vmatprep.subr.mxu0 0.0
        %625 = vmatpush2.msra.mxu0 0.0
        %626 = vmatprep.subr.mxu0 0.0
        %627 = vmatpush2.msra.mxu0 0.0
        %628 = vmatprep.subr.mxu0 0.0
        %629 = vmatpush2.msra.mxu0 0.0
        %630 = vmatprep.mubr.f32.mxu0 0.0
        %631 = vmatmul.mubr.f32.gmra.mxu0 %v564
        %v632 = vpop.f32.mrf.mxu0
        %v633 = vadd.f32 0.0, %v632
        %v634 = vpop.f32.mrf.mxu0
        %635 = vdwg.mxu0
        %v636 = vld [vmem:[#allocation2] sm:$0xff]
        %v637 = vld [vmem:[#allocation2 + $0x8] sm:$0xff]
        %v638 = vld [vmem:[#allocation2 + $0x10] sm:$0xff]
        %v639 = vld [vmem:[#allocation2 + $0x18] sm:$0xff]
        %v640 = vsel %vm343, %v414, -inf
        %641 = vmax.xlane.f32.xlu0 %v640
        %v642 = vpop.xlane.xlu0 %641
        %v643 = vsel %vm343, %v487, -inf
        %644 = vmax.xlane.f32.xlu0 %v643
        %v645 = vpop.xlane.xlu0 %644
        %v646 = vsel %vm343, %v560, -inf
        %647 = vmax.xlane.f32.xlu0 %v646
        %v648 = vpop.xlane.xlu0 %647
        %v649 = vsel %vm343, %v633, -inf
        %650 = vmax.xlane.f32.xlu0 %v649
        %v651 = vpop.xlane.xlu0 %650
        %v652 = vmax.f32 %v636, %v642
        %v653 = vmax.f32 %v637, %v645
        %v654 = vmax.f32 %v638, %v648
        %v655 = vmax.f32 %v639, %v651
        %v656 = vsub.f32 %v636, %v652
        %v657 = vsub.f32 %v637, %v653
        %v658 = vsub.f32 %v638, %v654
        %v659 = vsub.f32 %v639, %v655
        %v660 = vmul.f32 %v656, 1.442695
        %v661 = vpow.pop %v660
        %v662 = vmul.f32 %v657, 1.442695
        %v663 = vpow.pop %v662
        %v664 = vmul.f32 %v658, 1.442695
        %v665 = vpow.pop %v664
        %v666 = vmul.f32 %v659, 1.442695
        %v667 = vpow.pop %v666
        %669 = vset.pattern.permute.xlu0 0
        %670 = vperm.xlu0 %669, %v652
        %v671 = vpop.permute.xlu0 %670
        %674 = vset.pattern.permute.xlu0 0
        %675 = vperm.xlu0 %674, %v653
        %v676 = vpop.permute.xlu0 %675
        %679 = vset.pattern.permute.xlu0 0
        %680 = vperm.xlu0 %679, %v654
        %v681 = vpop.permute.xlu0 %680
        %684 = vset.pattern.permute.xlu0 0
        %685 = vperm.xlu0 %684, %v655
        %v686 = vpop.permute.xlu0 %685
        %v688 = vsub.f32 %v414, %v671
        %v689 = vsub.f32 %v487, %v676
        %v690 = vsub.f32 %v560, %v681
        %v691 = vsub.f32 %v633, %v686
        %v692 = vmul.f32 %v688, 1.442695
        %v693 = vpow.pop %v692
        %v694 = vmul.f32 %v689, 1.442695
        %v695 = vpow.pop %v694
        %v696 = vmul.f32 %v690, 1.442695
        %v697 = vpow.pop %v696
        %v698 = vmul.f32 %v691, 1.442695
        %v699 = vpow.pop %v698
        %v700 = vld [vmem:[#allocation3] sm:$0xff]
        %v701 = vld [vmem:[#allocation3 + $0x8] sm:$0xff]
        %v702 = vld [vmem:[#allocation3 + $0x10] sm:$0xff]
        %v703 = vld [vmem:[#allocation3 + $0x18] sm:$0xff]
        %v704 = vmul.f32 %v661, %v700
        %v705 = vmul.f32 %v663, %v701
        %v706 = vmul.f32 %v665, %v702
        %v707 = vmul.f32 %v667, %v703
        %v708 = vsel %vm343, %v693, 0.0
        %709 = vadd.xlane.f32.xlu0 %v708
        %v710 = vpop.xlane.xlu0 %709
        %v711 = vsel %vm343, %v695, 0.0
        %712 = vadd.xlane.f32.xlu0 %v711
        %v713 = vpop.xlane.xlu0 %712
        %v714 = vsel %vm343, %v697, 0.0
        %715 = vadd.xlane.f32.xlu0 %v714
        %v716 = vpop.xlane.xlu0 %715
        %v717 = vsel %vm343, %v699, 0.0
        %718 = vadd.xlane.f32.xlu0 %v717
        %v719 = vpop.xlane.xlu0 %718
        %v720 = vadd.f32 %v704, %v710
        %v721 = vadd.f32 %v705, %v713
        %v722 = vadd.f32 %v706, %v716
        %v723 = vadd.f32 %v707, %v719
        %vm724 = vcmask 7168
        %725 = vst.msk [vmem:[#allocation3] sm:$0xff] %vm724, %v720
        %726 = vst.msk [vmem:[#allocation3 + $0x8] sm:$0xff] %vm724, %v721
        %727 = vst.msk [vmem:[#allocation3 + $0x10] sm:$0xff] %vm724, %v722
        %728 = vst.msk [vmem:[#allocation3 + $0x18] sm:$0xff] %vm724, %v723
        %v729 = vld [vmem:[#allocation4] sm:$0xff]
        %v730 = vld [vmem:[#allocation4 + $0x8] sm:$0xff]
        %v731 = vld [vmem:[#allocation4 + $0x10] sm:$0xff]
        %v732 = vld [vmem:[#allocation4 + $0x18] sm:$0xff]
        %734 = vset.pattern.permute.xlu0 0
        %735 = vperm.xlu0 %734, %v661
        %v736 = vpop.permute.xlu0 %735
        %739 = vset.pattern.permute.xlu0 0
        %740 = vperm.xlu0 %739, %v663
        %v741 = vpop.permute.xlu0 %740
        %744 = vset.pattern.permute.xlu0 0
        %745 = vperm.xlu0 %744, %v665
        %v746 = vpop.permute.xlu0 %745
        %749 = vset.pattern.permute.xlu0 0
        %750 = vperm.xlu0 %749, %v667
        %v751 = vpop.permute.xlu0 %750
        %v753 = vmul.f32 %v736, %v729
        %v754 = vmul.f32 %v741, %v730
        %v755 = vmul.f32 %v746, %v731
        %v756 = vmul.f32 %v751, %v732
        %v757 = vld [vmem:[%s316] sm:$0xff]
        %v758 = vld [vmem:[%s316 + $0x8] sm:$0xff]
        %v759 = vld [vmem:[%s316 + $0x10] sm:$0xff]
        %v760 = vld [vmem:[%s316 + $0x18] sm:$0xff]
        %v762 = vsel %vm343, %v693, 0
        %764 = vmatprep.subr.mxu0 0.0
        %765 = vmatpush1.msra.mxu0 0.0
        %766 = vmatprep.subr.mxu0 0.0
        %767 = vmatpush1.msra.mxu0 0.0
        %768 = vmatprep.subr.mxu0 0.0
        %769 = vmatpush1.msra.mxu0 0.0
        %770 = vmatprep.subr.mxu0 0.0
        %771 = vmatpush1.msra.mxu0 0.0
        %772 = vmatprep.subr.mxu0 0.0
        %773 = vmatpush1.msra.mxu0 0.0
        %774 = vmatprep.subr.mxu0 0.0
        %775 = vmatpush1.msra.mxu0 0.0
        %776 = vmatprep.subr.mxu0 0.0
        %777 = vmatpush1.msra.mxu0 0.0
        %778 = vmatprep.subr.mxu0 0.0
        %779 = vmatpush1.msra.mxu0 0.0
        %780 = vmatprep.subr.mxu0 0.0
        %781 = vmatpush1.msra.mxu0 0.0
        %782 = vmatprep.subr.mxu0 0.0
        %783 = vmatpush1.msra.mxu0 0.0
        %784 = vmatprep.subr.mxu0 0.0
        %785 = vmatpush1.msra.mxu0 0.0
        %786 = vmatprep.subr.mxu0 0.0
        %787 = vmatpush1.msra.mxu0 0.0
        %788 = vmatprep.subr.mxu0 0.0
        %789 = vmatpush1.msra.mxu0 0.0
        %790 = vmatprep.subr.mxu0 0.0
        %791 = vmatpush1.msra.mxu0 0.0
        %792 = vmatprep.subr.mxu0 0.0
        %793 = vmatpush1.msra.mxu0 0.0
        %794 = vmatprep.subr.mxu0 0.0
        %795 = vmatpush1.msra.mxu0 %v757
        %796 = vmatprep.subr.mxu0 0.0
        %797 = vmatpush2.msra.mxu0 0.0
        %798 = vmatprep.subr.mxu0 0.0
        %799 = vmatpush2.msra.mxu0 0.0
        %800 = vmatprep.subr.mxu0 0.0
        %801 = vmatpush2.msra.mxu0 0.0
        %802 = vmatprep.subr.mxu0 0.0
        %803 = vmatpush2.msra.mxu0 0.0
        %804 = vmatprep.subr.mxu0 0.0
        %805 = vmatpush2.msra.mxu0 0.0
        %806 = vmatprep.subr.mxu0 0.0
        %807 = vmatpush2.msra.mxu0 0.0
        %808 = vmatprep.subr.mxu0 0.0
        %809 = vmatpush2.msra.mxu0 0.0
        %810 = vmatprep.subr.mxu0 0.0
        %811 = vmatpush2.msra.mxu0 0.0
        %812 = vmatprep.subr.mxu0 0.0
        %813 = vmatpush2.msra.mxu0 0.0
        %814 = vmatprep.subr.mxu0 0.0
        %815 = vmatpush2.msra.mxu0 0.0
        %816 = vmatprep.subr.mxu0 0.0
        %817 = vmatpush2.msra.mxu0 0.0
        %818 = vmatprep.subr.mxu0 0.0
        %819 = vmatpush2.msra.mxu0 0.0
        %820 = vmatprep.subr.mxu0 0.0
        %821 = vmatpush2.msra.mxu0 0.0
        %822 = vmatprep.subr.mxu0 0.0
        %823 = vmatpush2.msra.mxu0 0.0
        %824 = vmatprep.subr.mxu0 0.0
        %825 = vmatpush2.msra.mxu0 0.0
        %826 = vmatprep.subr.mxu0 0.0
        %827 = vmatpush2.msra.mxu0 0.0
        %828 = vmatprep.mubr.f32.mxu0 0.0
        %829 = vmatmul.mubr.f32.gmra.mxu0 %v762
        %v830 = vpop.f32.mrf.mxu0
        %v831 = vadd.f32 0.0, %v830
        %v832 = vpop.f32.mrf.mxu0
        %833 = vdwg.mxu0
        %v835 = vsel %vm343, %v695, 0
        %837 = vmatprep.subr.mxu0 0.0
        %838 = vmatpush1.msra.mxu0 0.0
        %839 = vmatprep.subr.mxu0 0.0
        %840 = vmatpush1.msra.mxu0 0.0
        %841 = vmatprep.subr.mxu0 0.0
        %842 = vmatpush1.msra.mxu0 0.0
        %843 = vmatprep.subr.mxu0 0.0
        %844 = vmatpush1.msra.mxu0 0.0
        %845 = vmatprep.subr.mxu0 0.0
        %846 = vmatpush1.msra.mxu0 0.0
        %847 = vmatprep.subr.mxu0 0.0
        %848 = vmatpush1.msra.mxu0 0.0
        %849 = vmatprep.subr.mxu0 0.0
        %850 = vmatpush1.msra.mxu0 0.0
        %851 = vmatprep.subr.mxu0 0.0
        %852 = vmatpush1.msra.mxu0 0.0
        %853 = vmatprep.subr.mxu0 0.0
        %854 = vmatpush1.msra.mxu0 0.0
        %855 = vmatprep.subr.mxu0 0.0
        %856 = vmatpush1.msra.mxu0 0.0
        %857 = vmatprep.subr.mxu0 0.0
        %858 = vmatpush1.msra.mxu0 0.0
        %859 = vmatprep.subr.mxu0 0.0
        %860 = vmatpush1.msra.mxu0 0.0
        %861 = vmatprep.subr.mxu0 0.0
        %862 = vmatpush1.msra.mxu0 0.0
        %863 = vmatprep.subr.mxu0 0.0
        %864 = vmatpush1.msra.mxu0 0.0
        %865 = vmatprep.subr.mxu0 0.0
        %866 = vmatpush1.msra.mxu0 0.0
        %867 = vmatprep.subr.mxu0 0.0
        %868 = vmatpush1.msra.mxu0 %v758
        %869 = vmatprep.subr.mxu0 0.0
        %870 = vmatpush2.msra.mxu0 0.0
        %871 = vmatprep.subr.mxu0 0.0
        %872 = vmatpush2.msra.mxu0 0.0
        %873 = vmatprep.subr.mxu0 0.0
        %874 = vmatpush2.msra.mxu0 0.0
        %875 = vmatprep.subr.mxu0 0.0
        %876 = vmatpush2.msra.mxu0 0.0
        %877 = vmatprep.subr.mxu0 0.0
        %878 = vmatpush2.msra.mxu0 0.0
        %879 = vmatprep.subr.mxu0 0.0
        %880 = vmatpush2.msra.mxu0 0.0
        %881 = vmatprep.subr.mxu0 0.0
        %882 = vmatpush2.msra.mxu0 0.0
        %883 = vmatprep.subr.mxu0 0.0
        %884 = vmatpush2.msra.mxu0 0.0
        %885 = vmatprep.subr.mxu0 0.0
        %886 = vmatpush2.msra.mxu0 0.0
        %887 = vmatprep.subr.mxu0 0.0
        %888 = vmatpush2.msra.mxu0 0.0
        %889 = vmatprep.subr.mxu0 0.0
        %890 = vmatpush2.msra.mxu0 0.0
        %891 = vmatprep.subr.mxu0 0.0
        %892 = vmatpush2.msra.mxu0 0.0
        %893 = vmatprep.subr.mxu0 0.0
        %894 = vmatpush2.msra.mxu0 0.0
        %895 = vmatprep.subr.mxu0 0.0
        %896 = vmatpush2.msra.mxu0 0.0
        %897 = vmatprep.subr.mxu0 0.0
        %898 = vmatpush2.msra.mxu0 0.0
        %899 = vmatprep.subr.mxu0 0.0
        %900 = vmatpush2.msra.mxu0 0.0
        %901 = vmatprep.mubr.f32.mxu0 0.0
        %902 = vmatmul.mubr.f32.gmra.mxu0 %v835
        %v903 = vpop.f32.mrf.mxu0
        %v904 = vadd.f32 0.0, %v903
        %v905 = vpop.f32.mrf.mxu0
        %906 = vdwg.mxu0
        %v908 = vsel %vm343, %v697, 0
        %910 = vmatprep.subr.mxu0 0.0
        %911 = vmatpush1.msra.mxu0 0.0
        %912 = vmatprep.subr.mxu0 0.0
        %913 = vmatpush1.msra.mxu0 0.0
        %914 = vmatprep.subr.mxu0 0.0
        %915 = vmatpush1.msra.mxu0 0.0
        %916 = vmatprep.subr.mxu0 0.0
        %917 = vmatpush1.msra.mxu0 0.0
        %918 = vmatprep.subr.mxu0 0.0
        %919 = vmatpush1.msra.mxu0 0.0
        %920 = vmatprep.subr.mxu0 0.0
        %921 = vmatpush1.msra.mxu0 0.0
        %922 = vmatprep.subr.mxu0 0.0
        %923 = vmatpush1.msra.mxu0 0.0
        %924 = vmatprep.subr.mxu0 0.0
        %925 = vmatpush1.msra.mxu0 0.0
        %926 = vmatprep.subr.mxu0 0.0
        %927 = vmatpush1.msra.mxu0 0.0
        %928 = vmatprep.subr.mxu0 0.0
        %929 = vmatpush1.msra.mxu0 0.0
        %930 = vmatprep.subr.mxu0 0.0
        %931 = vmatpush1.msra.mxu0 0.0
        %932 = vmatprep.subr.mxu0 0.0
        %933 = vmatpush1.msra.mxu0 0.0
        %934 = vmatprep.subr.mxu0 0.0
        %935 = vmatpush1.msra.mxu0 0.0
        %936 = vmatprep.subr.mxu0 0.0
        %937 = vmatpush1.msra.mxu0 0.0
        %938 = vmatprep.subr.mxu0 0.0
        %939 = vmatpush1.msra.mxu0 0.0
        %940 = vmatprep.subr.mxu0 0.0
        %941 = vmatpush1.msra.mxu0 %v759
        %942 = vmatprep.subr.mxu0 0.0
        %943 = vmatpush2.msra.mxu0 0.0
        %944 = vmatprep.subr.mxu0 0.0
        %945 = vmatpush2.msra.mxu0 0.0
        %946 = vmatprep.subr.mxu0 0.0
        %947 = vmatpush2.msra.mxu0 0.0
        %948 = vmatprep.subr.mxu0 0.0
        %949 = vmatpush2.msra.mxu0 0.0
        %950 = vmatprep.subr.mxu0 0.0
        %951 = vmatpush2.msra.mxu0 0.0
        %952 = vmatprep.subr.mxu0 0.0
        %953 = vmatpush2.msra.mxu0 0.0
        %954 = vmatprep.subr.mxu0 0.0
        %955 = vmatpush2.msra.mxu0 0.0
        %956 = vmatprep.subr.mxu0 0.0
        %957 = vmatpush2.msra.mxu0 0.0
        %958 = vmatprep.subr.mxu0 0.0
        %959 = vmatpush2.msra.mxu0 0.0
        %960 = vmatprep.subr.mxu0 0.0
        %961 = vmatpush2.msra.mxu0 0.0
        %962 = vmatprep.subr.mxu0 0.0
        %963 = vmatpush2.msra.mxu0 0.0
        %964 = vmatprep.subr.mxu0 0.0
        %965 = vmatpush2.msra.mxu0 0.0
        %966 = vmatprep.subr.mxu0 0.0
        %967 = vmatpush2.msra.mxu0 0.0
        %968 = vmatprep.subr.mxu0 0.0
        %969 = vmatpush2.msra.mxu0 0.0
        %970 = vmatprep.subr.mxu0 0.0
        %971 = vmatpush2.msra.mxu0 0.0
        %972 = vmatprep.subr.mxu0 0.0
        %973 = vmatpush2.msra.mxu0 0.0
        %974 = vmatprep.mubr.f32.mxu0 0.0
        %975 = vmatmul.mubr.f32.gmra.mxu0 %v908
        %v976 = vpop.f32.mrf.mxu0
        %v977 = vadd.f32 0.0, %v976
        %v978 = vpop.f32.mrf.mxu0
        %979 = vdwg.mxu0
        %v981 = vsel %vm343, %v699, 0
        %983 = vmatprep.subr.mxu0 0.0
        %984 = vmatpush1.msra.mxu0 0.0
        %985 = vmatprep.subr.mxu0 0.0
        %986 = vmatpush1.msra.mxu0 0.0
        %987 = vmatprep.subr.mxu0 0.0
        %988 = vmatpush1.msra.mxu0 0.0
        %989 = vmatprep.subr.mxu0 0.0
        %990 = vmatpush1.msra.mxu0 0.0
        %991 = vmatprep.subr.mxu0 0.0
        %992 = vmatpush1.msra.mxu0 0.0
        %993 = vmatprep.subr.mxu0 0.0
        %994 = vmatpush1.msra.mxu0 0.0
        %995 = vmatprep.subr.mxu0 0.0
        %996 = vmatpush1.msra.mxu0 0.0
        %997 = vmatprep.subr.mxu0 0.0
        %998 = vmatpush1.msra.mxu0 0.0
        %999 = vmatprep.subr.mxu0 0.0
        %1000 = vmatpush1.msra.mxu0 0.0
        %1001 = vmatprep.subr.mxu0 0.0
        %1002 = vmatpush1.msra.mxu0 0.0
        %1003 = vmatprep.subr.mxu0 0.0
        %1004 = vmatpush1.msra.mxu0 0.0
        %1005 = vmatprep.subr.mxu0 0.0
        %1006 = vmatpush1.msra.mxu0 0.0
        %1007 = vmatprep.subr.mxu0 0.0
        %1008 = vmatpush1.msra.mxu0 0.0
        %1009 = vmatprep.subr.mxu0 0.0
        %1010 = vmatpush1.msra.mxu0 0.0
        %1011 = vmatprep.subr.mxu0 0.0
        %1012 = vmatpush1.msra.mxu0 0.0
        %1013 = vmatprep.subr.mxu0 0.0
        %1014 = vmatpush1.msra.mxu0 %v760
        %1015 = vmatprep.subr.mxu0 0.0
        %1016 = vmatpush2.msra.mxu0 0.0
        %1017 = vmatprep.subr.mxu0 0.0
        %1018 = vmatpush2.msra.mxu0 0.0
        %1019 = vmatprep.subr.mxu0 0.0
        %1020 = vmatpush2.msra.mxu0 0.0
        %1021 = vmatprep.subr.mxu0 0.0
        %1022 = vmatpush2.msra.mxu0 0.0
        %1023 = vmatprep.subr.mxu0 0.0
        %1024 = vmatpush2.msra.mxu0 0.0
        %1025 = vmatprep.subr.mxu0 0.0
        %1026 = vmatpush2.msra.mxu0 0.0
        %1027 = vmatprep.subr.mxu0 0.0
        %1028 = vmatpush2.msra.mxu0 0.0
        %1029 = vmatprep.subr.mxu0 0.0
        %1030 = vmatpush2.msra.mxu0 0.0
        %1031 = vmatprep.subr.mxu0 0.0
        %1032 = vmatpush2.msra.mxu0 0.0
        %1033 = vmatprep.subr.mxu0 0.0
        %1034 = vmatpush2.msra.mxu0 0.0
        %1035 = vmatprep.subr.mxu0 0.0
        %1036 = vmatpush2.msra.mxu0 0.0
        %1037 = vmatprep.subr.mxu0 0.0
        %1038 = vmatpush2.msra.mxu0 0.0
        %1039 = vmatprep.subr.mxu0 0.0
        %1040 = vmatpush2.msra.mxu0 0.0
        %1041 = vmatprep.subr.mxu0 0.0
        %1042 = vmatpush2.msra.mxu0 0.0
        %1043 = vmatprep.subr.mxu0 0.0
        %1044 = vmatpush2.msra.mxu0 0.0
        %1045 = vmatprep.subr.mxu0 0.0
        %1046 = vmatpush2.msra.mxu0 0.0
        %1047 = vmatprep.mubr.f32.mxu0 0.0
        %1048 = vmatmul.mubr.f32.gmra.mxu0 %v981
        %v1049 = vpop.f32.mrf.mxu0
        %v1050 = vadd.f32 0.0, %v1049
        %v1051 = vpop.f32.mrf.mxu0
        %1052 = vdwg.mxu0
        %v1053 = vadd.f32 %v753, %v831
        %v1054 = vadd.f32 %v754, %v904
        %v1055 = vadd.f32 %v755, %v977
        %v1056 = vadd.f32 %v756, %v1050
        %1057 = vst.msk [vmem:[#allocation4] sm:$0xff] %vm343, %v1053
        %1058 = vst.msk [vmem:[#allocation4 + $0x8] sm:$0xff] %vm343, %v1054
        %1059 = vst.msk [vmem:[#allocation4 + $0x10] sm:$0xff] %vm343, %v1055
        %1060 = vst.msk [vmem:[#allocation4 + $0x18] sm:$0xff] %vm343, %v1056
        %1061 = vst.msk [vmem:[#allocation2] sm:$0xff] %vm724, %v652
        %1062 = vst.msk [vmem:[#allocation2 + $0x8] sm:$0xff] %vm724, %v653
        %1063 = vst.msk [vmem:[#allocation2 + $0x10] sm:$0xff] %vm724, %v654
        %1064 = vst.msk [vmem:[#allocation2 + $0x18] sm:$0xff] %vm724, %v655
        // Predicated region
        $region45: #{efficient_self_attention.1} parent=39 // pred_check
          %p1065 = pneg %p317
        $region46: #{efficient_self_attention.1} parent=39 // pred_check_branch
          %1067 = sbr.rel (%p1065) target = $region48
        $region47: #{efficient_self_attention.1} parent=39 // pred_region
          %v1068 = vld [vmem:[#allocation4] sm:$0xff]
          %v1069 = vld [vmem:[#allocation4 + $0x8] sm:$0xff]
          %v1070 = vld [vmem:[#allocation4 + $0x10] sm:$0xff]
          %v1071 = vld [vmem:[#allocation4 + $0x18] sm:$0xff]
          %v1072 = vld [vmem:[#allocation3] sm:$0xff]
          %v1073 = vld [vmem:[#allocation3 + $0x8] sm:$0xff]
          %v1074 = vld [vmem:[#allocation3 + $0x10] sm:$0xff]
          %v1075 = vld [vmem:[#allocation3 + $0x18] sm:$0xff]
          %1077 = vset.pattern.permute.xlu0 0
          %1078 = vperm.xlu0 %1077, %v1072
          %v1079 = vpop.permute.xlu0 %1078
          %1082 = vset.pattern.permute.xlu0 0
          %1083 = vperm.xlu0 %1082, %v1073
          %v1084 = vpop.permute.xlu0 %1083
          %1087 = vset.pattern.permute.xlu0 0
          %1088 = vperm.xlu0 %1087, %v1074
          %v1089 = vpop.permute.xlu0 %1088
          %1092 = vset.pattern.permute.xlu0 0
          %1093 = vperm.xlu0 %1092, %v1075
          %v1094 = vpop.permute.xlu0 %1093
          %v1096 = vrcp.pop %v1079
          %v1097 = vmul.f32 %v1068, %v1096
          %v1098 = vrcp.pop %v1084
          %v1099 = vmul.f32 %v1069, %v1098
          %v1100 = vrcp.pop %v1089
          %v1101 = vmul.f32 %v1070, %v1100
          %v1102 = vrcp.pop %v1094
          %v1103 = vmul.f32 %v1071, %v1102
          %v1104 = vld [vmem:[%s3] sm:$0xff]
          %s1105 = scalar_lea.vmem %s3, 8
          %v1106 = vld [vmem:[%s1105] sm:$0xff]
          %v1108 = vsel %vm343, %v1099, 0
          %1110 = vmatprep.subr.mxu0 0.0
          %1111 = vmatpush1.msra.mxu0 0.0
          %1112 = vmatprep.subr.mxu0 0.0
          %1113 = vmatpush1.msra.mxu0 0.0
          %1114 = vmatprep.subr.mxu0 0.0
          %1115 = vmatpush1.msra.mxu0 0.0
          %1116 = vmatprep.subr.mxu0 0.0
          %1117 = vmatpush1.msra.mxu0 0.0
          %1118 = vmatprep.subr.mxu0 0.0
          %1119 = vmatpush1.msra.mxu0 0.0
          %1120 = vmatprep.subr.mxu0 0.0
          %1121 = vmatpush1.msra.mxu0 0.0
          %1122 = vmatprep.subr.mxu0 0.0
          %1123 = vmatpush1.msra.mxu0 0.0
          %1124 = vmatprep.subr.mxu0 0.0
          %1125 = vmatpush1.msra.mxu0 0.0
          %1126 = vmatprep.subr.mxu0 0.0
          %1127 = vmatpush1.msra.mxu0 0.0
          %1128 = vmatprep.subr.mxu0 0.0
          %1129 = vmatpush1.msra.mxu0 0.0
          %1130 = vmatprep.subr.mxu0 0.0
          %1131 = vmatpush1.msra.mxu0 0.0
          %1132 = vmatprep.subr.mxu0 0.0
          %1133 = vmatpush1.msra.mxu0 0.0
          %1134 = vmatprep.subr.mxu0 0.0
          %1135 = vmatpush1.msra.mxu0 0.0
          %1136 = vmatprep.subr.mxu0 0.0
          %1137 = vmatpush1.msra.mxu0 0.0
          %1138 = vmatprep.subr.mxu0 0.0
          %1139 = vmatpush1.msra.mxu0 0.0
          %1140 = vmatprep.subr.mxu0 0.0
          %1141 = vmatpush1.msra.mxu0 %v1106
          %1142 = vmatprep.subr.mxu0 0.0
          %1143 = vmatpush2.msra.mxu0 0.0
          %1144 = vmatprep.subr.mxu0 0.0
          %1145 = vmatpush2.msra.mxu0 0.0
          %1146 = vmatprep.subr.mxu0 0.0
          %1147 = vmatpush2.msra.mxu0 0.0
          %1148 = vmatprep.subr.mxu0 0.0
          %1149 = vmatpush2.msra.mxu0 0.0
          %1150 = vmatprep.subr.mxu0 0.0
          %1151 = vmatpush2.msra.mxu0 0.0
          %1152 = vmatprep.subr.mxu0 0.0
          %1153 = vmatpush2.msra.mxu0 0.0
          %1154 = vmatprep.subr.mxu0 0.0
          %1155 = vmatpush2.msra.mxu0 0.0
          %1156 = vmatprep.subr.mxu0 0.0
          %1157 = vmatpush2.msra.mxu0 0.0
          %1158 = vmatprep.subr.mxu0 0.0
          %1159 = vmatpush2.msra.mxu0 0.0
          %1160 = vmatprep.subr.mxu0 0.0
          %1161 = vmatpush2.msra.mxu0 0.0
          %1162 = vmatprep.subr.mxu0 0.0
          %1163 = vmatpush2.msra.mxu0 0.0
          %1164 = vmatprep.subr.mxu0 0.0
          %1165 = vmatpush2.msra.mxu0 0.0
          %1166 = vmatprep.subr.mxu0 0.0
          %1167 = vmatpush2.msra.mxu0 0.0
          %1168 = vmatprep.subr.mxu0 0.0
          %1169 = vmatpush2.msra.mxu0 0.0
          %1170 = vmatprep.subr.mxu0 0.0
          %1171 = vmatpush2.msra.mxu0 0.0
          %1172 = vmatprep.subr.mxu0 0.0
          %1173 = vmatpush2.msra.mxu0 0.0
          %1174 = vmatprep.mubr.f32.mxu0 0.0
          %1175 = vmatmul.mubr.f32.gmra.mxu0 %v1108
          %v1176 = vpop.f32.mrf.mxu0
          %v1177 = vadd.f32 0.0, %v1176
          %v1178 = vpop.f32.mrf.mxu0
          %1179 = vdwg.mxu0
          %v1181 = vsel %vm343, %v1097, 0
          %1183 = vmatprep.subr.mxu0 0.0
          %1184 = vmatpush1.msra.mxu0 0.0
          %1185 = vmatprep.subr.mxu0 0.0
          %1186 = vmatpush1.msra.mxu0 0.0
          %1187 = vmatprep.subr.mxu0 0.0
          %1188 = vmatpush1.msra.mxu0 0.0
          %1189 = vmatprep.subr.mxu0 0.0
          %1190 = vmatpush1.msra.mxu0 0.0
          %1191 = vmatprep.subr.mxu0 0.0
          %1192 = vmatpush1.msra.mxu0 0.0
          %1193 = vmatprep.subr.mxu0 0.0
          %1194 = vmatpush1.msra.mxu0 0.0
          %1195 = vmatprep.subr.mxu0 0.0
          %1196 = vmatpush1.msra.mxu0 0.0
          %1197 = vmatprep.subr.mxu0 0.0
          %1198 = vmatpush1.msra.mxu0 0.0
          %1199 = vmatprep.subr.mxu0 0.0
          %1200 = vmatpush1.msra.mxu0 0.0
          %1201 = vmatprep.subr.mxu0 0.0
          %1202 = vmatpush1.msra.mxu0 0.0
          %1203 = vmatprep.subr.mxu0 0.0
          %1204 = vmatpush1.msra.mxu0 0.0
          %1205 = vmatprep.subr.mxu0 0.0
          %1206 = vmatpush1.msra.mxu0 0.0
          %1207 = vmatprep.subr.mxu0 0.0
          %1208 = vmatpush1.msra.mxu0 0.0
          %1209 = vmatprep.subr.mxu0 0.0
          %1210 = vmatpush1.msra.mxu0 0.0
          %1211 = vmatprep.subr.mxu0 0.0
          %1212 = vmatpush1.msra.mxu0 0.0
          %1213 = vmatprep.subr.mxu0 0.0
          %1214 = vmatpush1.msra.mxu0 %v1104
          %1215 = vmatprep.subr.mxu0 0.0
          %1216 = vmatpush2.msra.mxu0 0.0
          %1217 = vmatprep.subr.mxu0 0.0
          %1218 = vmatpush2.msra.mxu0 0.0
          %1219 = vmatprep.subr.mxu0 0.0
          %1220 = vmatpush2.msra.mxu0 0.0
          %1221 = vmatprep.subr.mxu0 0.0
          %1222 = vmatpush2.msra.mxu0 0.0
          %1223 = vmatprep.subr.mxu0 0.0
          %1224 = vmatpush2.msra.mxu0 0.0
          %1225 = vmatprep.subr.mxu0 0.0
          %1226 = vmatpush2.msra.mxu0 0.0
          %1227 = vmatprep.subr.mxu0 0.0
          %1228 = vmatpush2.msra.mxu0 0.0
          %1229 = vmatprep.subr.mxu0 0.0
          %1230 = vmatpush2.msra.mxu0 0.0
          %1231 = vmatprep.subr.mxu0 0.0
          %1232 = vmatpush2.msra.mxu0 0.0
          %1233 = vmatprep.subr.mxu0 0.0
          %1234 = vmatpush2.msra.mxu0 0.0
          %1235 = vmatprep.subr.mxu0 0.0
          %1236 = vmatpush2.msra.mxu0 0.0
          %1237 = vmatprep.subr.mxu0 0.0
          %1238 = vmatpush2.msra.mxu0 0.0
          %1239 = vmatprep.subr.mxu0 0.0
          %1240 = vmatpush2.msra.mxu0 0.0
          %1241 = vmatprep.subr.mxu0 0.0
          %1242 = vmatpush2.msra.mxu0 0.0
          %1243 = vmatprep.subr.mxu0 0.0
          %1244 = vmatpush2.msra.mxu0 0.0
          %1245 = vmatprep.subr.mxu0 0.0
          %1246 = vmatpush2.msra.mxu0 0.0
          %1247 = vmatprep.mubr.f32.mxu0 0.0
          %1248 = vmatmul.mubr.f32.gmra.mxu0 %v1181
          %v1249 = vpop.f32.mrf.mxu0
          %v1250 = vadd.f32 %v1177, %v1249
          %v1251 = vpop.f32.mrf.mxu0
          %1252 = vdwg.mxu0
          %s1253 = scalar_lea.vmem %s3, 16
          %v1254 = vld [vmem:[%s1253] sm:$0xff]
          %v1256 = vsel %vm343, %v1101, 0
          %1258 = vmatprep.subr.mxu0 0.0
          %1259 = vmatpush1.msra.mxu0 0.0
          %1260 = vmatprep.subr.mxu0 0.0
          %1261 = vmatpush1.msra.mxu0 0.0
          %1262 = vmatprep.subr.mxu0 0.0
          %1263 = vmatpush1.msra.mxu0 0.0
          %1264 = vmatprep.subr.mxu0 0.0
          %1265 = vmatpush1.msra.mxu0 0.0
          %1266 = vmatprep.subr.mxu0 0.0
          %1267 = vmatpush1.msra.mxu0 0.0
          %1268 = vmatprep.subr.mxu0 0.0
          %1269 = vmatpush1.msra.mxu0 0.0
          %1270 = vmatprep.subr.mxu0 0.0
          %1271 = vmatpush1.msra.mxu0 0.0
          %1272 = vmatprep.subr.mxu0 0.0
          %1273 = vmatpush1.msra.mxu0 0.0
          %1274 = vmatprep.subr.mxu0 0.0
          %1275 = vmatpush1.msra.mxu0 0.0
          %1276 = vmatprep.subr.mxu0 0.0
          %1277 = vmatpush1.msra.mxu0 0.0
          %1278 = vmatprep.subr.mxu0 0.0
          %1279 = vmatpush1.msra.mxu0 0.0
          %1280 = vmatprep.subr.mxu0 0.0
          %1281 = vmatpush1.msra.mxu0 0.0
          %1282 = vmatprep.subr.mxu0 0.0
          %1283 = vmatpush1.msra.mxu0 0.0
          %1284 = vmatprep.subr.mxu0 0.0
          %1285 = vmatpush1.msra.mxu0 0.0
          %1286 = vmatprep.subr.mxu0 0.0
          %1287 = vmatpush1.msra.mxu0 0.0
          %1288 = vmatprep.subr.mxu0 0.0
          %1289 = vmatpush1.msra.mxu0 %v1254
          %1290 = vmatprep.subr.mxu0 0.0
          %1291 = vmatpush2.msra.mxu0 0.0
          %1292 = vmatprep.subr.mxu0 0.0
          %1293 = vmatpush2.msra.mxu0 0.0
          %1294 = vmatprep.subr.mxu0 0.0
          %1295 = vmatpush2.msra.mxu0 0.0
          %1296 = vmatprep.subr.mxu0 0.0
          %1297 = vmatpush2.msra.mxu0 0.0
          %1298 = vmatprep.subr.mxu0 0.0
          %1299 = vmatpush2.msra.mxu0 0.0
          %1300 = vmatprep.subr.mxu0 0.0
          %1301 = vmatpush2.msra.mxu0 0.0
          %1302 = vmatprep.subr.mxu0 0.0
          %1303 = vmatpush2.msra.mxu0 0.0
          %1304 = vmatprep.subr.mxu0 0.0
          %1305 = vmatpush2.msra.mxu0 0.0
          %1306 = vmatprep.subr.mxu0 0.0
          %1307 = vmatpush2.msra.mxu0 0.0
          %1308 = vmatprep.subr.mxu0 0.0
          %1309 = vmatpush2.msra.mxu0 0.0
          %1310 = vmatprep.subr.mxu0 0.0
          %1311 = vmatpush2.msra.mxu0 0.0
          %1312 = vmatprep.subr.mxu0 0.0
          %1313 = vmatpush2.msra.mxu0 0.0
          %1314 = vmatprep.subr.mxu0 0.0
          %1315 = vmatpush2.msra.mxu0 0.0
          %1316 = vmatprep.subr.mxu0 0.0
          %1317 = vmatpush2.msra.mxu0 0.0
          %1318 = vmatprep.subr.mxu0 0.0
          %1319 = vmatpush2.msra.mxu0 0.0
          %1320 = vmatprep.subr.mxu0 0.0
          %1321 = vmatpush2.msra.mxu0 0.0
          %1322 = vmatprep.mubr.f32.mxu0 0.0
          %1323 = vmatmul.mubr.f32.gmra.mxu0 %v1256
          %v1324 = vpop.f32.mrf.mxu0
          %v1325 = vadd.f32 0.0, %v1324
          %v1326 = vpop.f32.mrf.mxu0
          %1327 = vdwg.mxu0
          %v1328 = vadd.f32 %v1250, %v1325
          %s1329 = scalar_lea.vmem %s3, 24
          %v1330 = vld [vmem:[%s1329] sm:$0xff]
          %v1332 = vsel %vm343, %v1103, 0
          %1334 = vmatprep.subr.mxu0 0.0
          %1335 = vmatpush1.msra.mxu0 0.0
          %1336 = vmatprep.subr.mxu0 0.0
          %1337 = vmatpush1.msra.mxu0 0.0
          %1338 = vmatprep.subr.mxu0 0.0
          %1339 = vmatpush1.msra.mxu0 0.0
          %1340 = vmatprep.subr.mxu0 0.0
          %1341 = vmatpush1.msra.mxu0 0.0
          %1342 = vmatprep.subr.mxu0 0.0
          %1343 = vmatpush1.msra.mxu0 0.0
          %1344 = vmatprep.subr.mxu0 0.0
          %1345 = vmatpush1.msra.mxu0 0.0
          %1346 = vmatprep.subr.mxu0 0.0
          %1347 = vmatpush1.msra.mxu0 0.0
          %1348 = vmatprep.subr.mxu0 0.0
          %1349 = vmatpush1.msra.mxu0 0.0
          %1350 = vmatprep.subr.mxu0 0.0
          %1351 = vmatpush1.msra.mxu0 0.0
          %1352 = vmatprep.subr.mxu0 0.0
          %1353 = vmatpush1.msra.mxu0 0.0
          %1354 = vmatprep.subr.mxu0 0.0
          %1355 = vmatpush1.msra.mxu0 0.0
          %1356 = vmatprep.subr.mxu0 0.0
          %1357 = vmatpush1.msra.mxu0 0.0
          %1358 = vmatprep.subr.mxu0 0.0
          %1359 = vmatpush1.msra.mxu0 0.0
          %1360 = vmatprep.subr.mxu0 0.0
          %1361 = vmatpush1.msra.mxu0 0.0
          %1362 = vmatprep.subr.mxu0 0.0
          %1363 = vmatpush1.msra.mxu0 0.0
          %1364 = vmatprep.subr.mxu0 0.0
          %1365 = vmatpush1.msra.mxu0 %v1330
          %1366 = vmatprep.subr.mxu0 0.0
          %1367 = vmatpush2.msra.mxu0 0.0
          %1368 = vmatprep.subr.mxu0 0.0
          %1369 = vmatpush2.msra.mxu0 0.0
          %1370 = vmatprep.subr.mxu0 0.0
          %1371 = vmatpush2.msra.mxu0 0.0
          %1372 = vmatprep.subr.mxu0 0.0
          %1373 = vmatpush2.msra.mxu0 0.0
          %1374 = vmatprep.subr.mxu0 0.0
          %1375 = vmatpush2.msra.mxu0 0.0
          %1376 = vmatprep.subr.mxu0 0.0
          %1377 = vmatpush2.msra.mxu0 0.0
          %1378 = vmatprep.subr.mxu0 0.0
          %1379 = vmatpush2.msra.mxu0 0.0
          %1380 = vmatprep.subr.mxu0 0.0
          %1381 = vmatpush2.msra.mxu0 0.0
          %1382 = vmatprep.subr.mxu0 0.0
          %1383 = vmatpush2.msra.mxu0 0.0
          %1384 = vmatprep.subr.mxu0 0.0
          %1385 = vmatpush2.msra.mxu0 0.0
          %1386 = vmatprep.subr.mxu0 0.0
          %1387 = vmatpush2.msra.mxu0 0.0
          %1388 = vmatprep.subr.mxu0 0.0
          %1389 = vmatpush2.msra.mxu0 0.0
          %1390 = vmatprep.subr.mxu0 0.0
          %1391 = vmatpush2.msra.mxu0 0.0
          %1392 = vmatprep.subr.mxu0 0.0
          %1393 = vmatpush2.msra.mxu0 0.0
          %1394 = vmatprep.subr.mxu0 0.0
          %1395 = vmatpush2.msra.mxu0 0.0
          %1396 = vmatprep.subr.mxu0 0.0
          %1397 = vmatpush2.msra.mxu0 0.0
          %1398 = vmatprep.mubr.f32.mxu0 0.0
          %1399 = vmatmul.mubr.f32.gmra.mxu0 %v1332
          %v1400 = vpop.f32.mrf.mxu0
          %v1401 = vadd.f32 0.0, %v1400
          %v1402 = vpop.f32.mrf.mxu0
          %1403 = vdwg.mxu0
          %v1404 = vadd.f32 %v1328, %v1401
          %v1405 = vld [vmem:[%s4] sm:$0x1]
          %v1407 = vlaneseq
          %v1408 = vshrl.u32 %v1407, 7
          %v1409 = vsub.s32 0, %v1408
          %v1410 = vrot.slane %v1405, %v1409
          %v1412 = vadd.f32 %v1404, %v1410
          %vm1413 = vcmask 261120
          %1414 = vst.msk [vmem:[%s292] sm:$0xff] %vm1413, %v1412
        $region48: #{efficient_self_attention.1} parent=39 // pred_fallthru
          _
        %s1415 = sand.u32 %s174, 1
        %s1416 = scalar_lea.sflag [#allocation6], %s1415
        %s1417 = sand.u32 %s174, 1
        %s1418 = smul.addr %s1417, 8
        %s1419 = scalar_lea.vmem [#allocation5], %s1418
        // Predicated region
        $region49: #{efficient_self_attention.1} parent=39 // pred_check
          %p1420 = pneg %p184
        $region50: #{efficient_self_attention.1} parent=39 // pred_check_branch
          %1422 = sbr.rel (%p1420) target = $region52
        $region51: #{efficient_self_attention.1} parent=39 // pred_region
          %s1424 = ssub.s32 128, 128
          %1425 = vsyncadd %s1416, %s1424
          %s1426 = sadd.s32 %s25, %s24
          %s1427 = smul.addr %s1426, 128
          %s1428 = scalar_lea.hbm %s5, %s1427
          %s1430 = sshll.u32 %s1419, 4
          %s1431 = int_to_ptr.vmem [resolvable:$true] %s1430
          %1433 = dma.vmem_to_hbm [thread:$0]  %s1431, 128, %s1428, %s1416
        $region52: #{efficient_self_attention.1} parent=39 // pred_fallthru
          _
      $region40: #{efficient_self_attention.1} parent=5 // pred_fallthru
        _
      %p1434 = scmp.le.s32.totalorder 2, %s14
      // Predicated region
      $region53: #{efficient_self_attention.1} parent=5 // pred_check
        %p1435 = pneg %p1434
      $region54: #{efficient_self_attention.1} parent=5 // pred_check_branch
        %1437 = sbr.rel (%p1435) target = $region56
      $region55: #{efficient_self_attention.1} parent=5 // pred_region
        %s1438 = ssub.s32 %s14, 2
        // Predicated region
        $region57: #{efficient_self_attention.1} parent=55 // pred_check
          %p1439 = pneg %p190
        $region58: #{efficient_self_attention.1} parent=55 // pred_check_branch
          %1441 = sbr.rel (%p1439) target = $region60
        $region59: #{efficient_self_attention.1} parent=55 // pred_region
          %s1442 = sand.u32 %s175, 1
          %s1443 = scalar_lea.sflag [#allocation6], %s1442
          %s1444 = sand.u32 %s175, 1
          %s1445 = smul.addr %s1444, 8
          %s1446 = scalar_lea.vmem [#allocation5], %s1445
          %1447 = dma.done %s1443, 128
        $region60: #{efficient_self_attention.1} parent=55 // pred_fallthru
          _
      $region56: #{efficient_self_attention.1} parent=5 // pred_fallthru
        _
    $region6: #{efficient_self_attention.1} parent=1 // loop_footer
      %s18 = sadd.s32 1, %s14
    $region7: #{efficient_self_attention.1} parent=1 // loop_footer_branch
      %13 = sbr.rel target = $region3
    $region8: #{efficient_self_attention.1} parent=1 // loop_exit
      _
    %1448 = vsyncpa [#allocation6], 1
    %s1449 = scalar_lea.sflag [#allocation6], 1
    %1450 = vsyncpa %s1449, 1

</llo_original>
